<compile_context>
chip_gen: v7x
topology: tpu7x:2x2x1
jax: 0.10.0
libtpu: 0.0.40
codegen_flags: <defaults>
</compile_context>

<pallas_src>
import functools

import jax
import jax.numpy as jnp
from jax.experimental import pallas as pl
from jax.experimental.pallas import tpu as pltpu


# ----------------------------------------------------------------------------
# Single fused Pallas kernel: a chain of  y = act(x @ W + b)  layers.
# All operands are whole-array VMEM blocks; the kernel launches exactly once
# per forward pass.
# ----------------------------------------------------------------------------
def _fused_net_kernel(*refs, activations):
    n = len(activations)
    assert len(refs) == 2 * n + 2
    x_ref = refs[0]
    w_refs = refs[1:1 + n]
    b_refs = refs[1 + n:1 + 2 * n]
    o_ref = refs[1 + 2 * n]

    h = x_ref[...].astype(jnp.float32)
    for li in range(n):
        w = w_refs[li][...]                                   # (K, N) bf16
        y = jnp.dot(h.astype(jnp.bfloat16), w,
                    preferred_element_type=jnp.float32)       # f32 accumulate
        y = y + b_refs[li][...]                               # (1, N) f32 bias
        act = activations[li]
        if act == "leaky_relu":
            y = jnp.where(y >= 0.0, y, jnp.float32(0.01) * y)  # torch default slope
        elif act == "tanh":
            y = jnp.tanh(y)
        h = y
    o_ref[...] = h.astype(o_ref.dtype)


def fused_net_forward(xflat, weights, biases, activations):
    """xflat: (B, K0) f32; weights[i]: (K_i, N_i) bf16; biases[i]: (1, N_i) f32."""
    n = len(weights)
    B = xflat.shape[0]
    n_out = weights[-1].shape[1]
    kernel = functools.partial(_fused_net_kernel, activations=tuple(activations))
    return pl.pallas_call(
        kernel,
        out_shape=jax.ShapeDtypeStruct((B, n_out), jnp.float32),
        in_specs=[pl.BlockSpec(memory_space=pltpu.MemorySpace.VMEM)] * (1 + 2 * n),
        out_specs=pl.BlockSpec(memory_space=pltpu.MemorySpace.VMEM),
    )(xflat, *weights, *biases)


# ----------------------------------------------------------------------------
# One-time parameter preparation (outside the hot path)
# ----------------------------------------------------------------------------
def _conv_layer_as_dense(w, b, in_shape, stride):
    """Fold a valid-padding Conv2d into a dense matrix acting on the
    NCHW-flattened input and producing the NCHW-flattened output.
    Returns (dense (C*H*W, OC*OH*OW), bias_flat (OC*OH*OW,), out_shape)."""
    C, H, W = in_shape
    eye = jnp.eye(C * H * W, dtype=jnp.float32).reshape(C * H * W, C, H, W)
    cols = jax.lax.conv_general_dilated(
        eye, w, (stride, stride), "VALID",
        dimension_numbers=("NCHW", "OIHW", "NCHW"))            # (CHW, OC, OH, OW)
    _, OC, OH, OW = cols.shape
    dense = cols.reshape(C * H * W, OC * OH * OW)
    bias_flat = jnp.repeat(b, OH * OW)                         # (oc, oh, ow) order
    return dense, bias_flat, (OC, OH, OW)


def _merge_actor_critic(wa, ba, wc, bc, shared_input):
    """Merge an (actor, critic) Linear pair into one (K, Na+Nc) matrix.
    torch Linear weights are (out, in); stored transposed for x @ W."""
    wa_t, wc_t = wa.T, wc.T
    if shared_input:
        assert wa_t.shape[0] == wc_t.shape[0]
        wm = jnp.concatenate([wa_t, wc_t], axis=1)
    else:
        ka, na = wa_t.shape
        kc, nc = wc_t.shape
        wm = jnp.zeros((ka + kc, na + nc), dtype=jnp.float32)
        wm = wm.at[:ka, :na].set(wa_t)
        wm = wm.at[ka:, na:].set(wc_t)
    bm = jnp.concatenate([ba, bc])
    return wm, bm


def prepare_fused_params(params, obs_shape, num_actions):
    """Transform torch-layout params into the fused layer stack consumed by the
    Pallas kernel: pre-transposed (K,N) bf16 weights, (1,N) f32 biases, /255
    folded into the first conv, actor+critic merged, head padded to a
    lane-dense 128-wide output slab."""
    weights, biases, acts = [], [], []

    in_shape = obs_shape
    for idx, (w, b, stride) in enumerate(params["convs"]):
        dense, bias_flat, in_shape = _conv_layer_as_dense(w, b, in_shape, stride)
        if idx == 0:
            dense = dense * jnp.float32(1.0 / 255.0)    # fold inputs/255.0 into weights
        weights.append(dense)
        biases.append(bias_flat)
        acts.append("leaky_relu")

    w, b = params["fc0"]
    weights.append(w.T)
    biases.append(b)
    acts.append("leaky_relu")

    for li, ((wa, ba), (wc, bc)) in enumerate(
            zip(params["actor_hidden"], params["critic_hidden"])):
        wm, bm = _merge_actor_critic(wa, ba, wc, bc, shared_input=(li == 0))
        weights.append(wm)
        biases.append(bm)
        acts.append("tanh")

    wa, ba = params["actor_out"]
    wc, bc = params["critic_out"]
    shared = len(params["actor_hidden"]) == 0
    w_head, b_head = _merge_actor_critic(wa, ba, wc, bc, shared_input=shared)
    n_real = w_head.shape[1]                      # num_actions + 1
    n_pad = ((n_real + 127) // 128) * 128         # lane-dense output slab
    w_head = jnp.pad(w_head, ((0, 0), (0, n_pad - n_real)))
    b_head = jnp.pad(b_head, (0, n_pad - n_real))
    weights.append(w_head)
    biases.append(b_head)
    acts.append("none")

    return {
        "weights": [w.astype(jnp.bfloat16) for w in weights],
        "biases": [b.reshape(1, -1).astype(jnp.float32) for b in biases],
        "activations": tuple(acts),
        "num_actions": int(num_actions),
    }


# ----------------------------------------------------------------------------
# Conv2DModelFree.forward (share_weights=True).  `masks` is unused because
# the module is instantiated with use_recurrent=False.
# ----------------------------------------------------------------------------
def conv2d_model_free_forward(fused, inputs):
    """inputs: (B, C, H, W). Returns (logits (B, A), value (B, 1))."""
    B = inputs.shape[0]
    xflat = inputs.reshape(B, -1)                 # NCHW flatten, no data movement
    out = fused_net_forward(xflat, fused["weights"], fused["biases"],
                            fused["activations"])
    na = fused["num_actions"]
    return out[:, :na], out[:, na:na + 1]


# ----------------------------------------------------------------------------
# Pure-JAX reference for verification (full f32, original torch layout)
# ----------------------------------------------------------------------------
def reference_forward(params, inputs):
    x = inputs / 255.0
    for (w, b, stride) in params["convs"]:
        x = jax.lax.conv_general_dilated(
            x, w, (stride, stride), "VALID",
            dimension_numbers=("NCHW", "OIHW", "NCHW"))
        x = x + b.reshape(1, -1, 1, 1)
        x = jnp.where(x >= 0, x, 0.01 * x)
    x = x.reshape(x.shape[0], -1)

    def lin(h, w, b):
        return h @ w.T + b

    w, b = params["fc0"]
    x = lin(x, w, b)
    x = jnp.where(x >= 0, x, 0.01 * x)

    h = x
    for w, b in params["actor_hidden"]:
        h = jnp.tanh(lin(h, w, b))
    w, b = params["actor_out"]
    logits = lin(h, w, b)

    h = x
    for w, b in params["critic_hidden"]:
        h = jnp.tanh(lin(h, w, b))
    w, b = params["critic_out"]
    value = lin(h, w, b)
    return logits, value


# ----------------------------------------------------------------------------
# Deterministic parameter init (shapes follow the module's __init__)
# ----------------------------------------------------------------------------
def init_params(key, obs_shape, conv_specs, fc_layers, num_actions):
    C, H, W = obs_shape
    keys = iter(jax.random.split(key, 32))

    def rnd(shape, scale=0.1):
        return scale * jax.random.normal(next(keys), shape, dtype=jnp.float32)

    params = {"convs": []}
    in_ch, h, w = C, H, W
    for (oc, k, s) in conv_specs:
        params["convs"].append((rnd((oc, in_ch, k, k)), rnd((oc,)), s))
        h = (h - k) // s + 1
        w = (w - k) // s + 1
        in_ch = oc
    flat = in_ch * h * w

    fc0_out = fc_layers[0]
    params["fc0"] = (rnd((fc0_out, flat)), rnd((fc0_out,)))

    params["actor_hidden"] = []
    params["critic_hidden"] = []
    nxt = fc0_out
    for fc in fc_layers[1:]:
        params["actor_hidden"].append((rnd((fc, nxt)), rnd((fc,))))
        params["critic_hidden"].append((rnd((fc, nxt)), rnd((fc,))))
        nxt = fc
    params["actor_out"] = (rnd((num_actions, nxt)), rnd((num_actions,)))
    params["critic_out"] = (rnd((1, nxt)), rnd((1,)))
    return params


if __name__ == "__main__":
    # Config consistent with the module:
    #   obs_shape=(4,16,16), conv_layers[0]=[(8,4,2),(16,3,1)], fc_layers[0]=[32,32],
    #   action_space=6, share_weights=True, use_recurrent=False, batch=2.
    obs_shape = (4, 16, 16)
    conv_specs = [(8, 4, 2), (16, 3, 1)]     # (out_channels, kernel, stride)
    fc_layers = [32, 32]
    num_actions = 6
    batch = 2

    key = jax.random.PRNGKey(0)
    k_param, k_inp = jax.random.split(key)
    params = init_params(k_param, obs_shape, conv_specs, fc_layers, num_actions)
    fused = prepare_fused_params(params, obs_shape, num_actions)

    inputs = jax.random.uniform(
        k_inp, (batch,) + obs_shape, minval=0.0, maxval=255.0, dtype=jnp.float32)

    forward = jax.jit(lambda x: conv2d_model_free_forward(fused, x))
    logits, value = forward(inputs)
    logits, value = jax.block_until_ready((logits, value))

    ref_logits, ref_value = reference_forward(params, inputs)
    assert logits.shape == (batch, num_actions)
    assert value.shape == (batch, 1)
    assert jnp.allclose(logits, ref_logits, rtol=2e-2, atol=2e-2)
    assert jnp.allclose(value, ref_value, rtol=2e-2, atol=2e-2)

    print("KERNEL_OK")
</pallas_src>

<mosaic_0001>
module attributes {stable_mosaic.version = 11 : i64} {
  func.func @_fused_net_kernel(%arg0: memref<2x1024xf32, #tpu.memory_space<vmem>>, %arg1: memref<1024x392xbf16, #tpu.memory_space<vmem>>, %arg2: memref<392x400xbf16, #tpu.memory_space<vmem>>, %arg3: memref<400x32xbf16, #tpu.memory_space<vmem>>, %arg4: memref<32x64xbf16, #tpu.memory_space<vmem>>, %arg5: memref<64x128xbf16, #tpu.memory_space<vmem>>, %arg6: memref<1x392xf32, #tpu.memory_space<vmem>>, %arg7: memref<1x400xf32, #tpu.memory_space<vmem>>, %arg8: memref<1x32xf32, #tpu.memory_space<vmem>>, %arg9: memref<1x64xf32, #tpu.memory_space<vmem>>, %arg10: memref<1x128xf32, #tpu.memory_space<vmem>>, %arg11: memref<2x128xf32, #tpu.memory_space<vmem>>) attributes {dimension_semantics = [], scalar_prefetch = 0 : i64, scratch_operands = 0 : i64, tpu.core_type = #tpu.core_type<tc>} {
    %c0 = arith.constant 0 : index
    %c0_0 = arith.constant 0 : index
    %0 = vector.load %arg0[%c0, %c0_0] : memref<2x1024xf32, #tpu.memory_space<vmem>>, vector<2x1024xf32>
    %c0_1 = arith.constant 0 : index
    %c0_2 = arith.constant 0 : index
    %1 = vector.load %arg1[%c0_1, %c0_2] : memref<1024x392xbf16, #tpu.memory_space<vmem>>, vector<1024x392xbf16>
    %2 = arith.truncf %0 : vector<2x1024xf32> to vector<2x1024xbf16>
    %cst = arith.constant dense<0.000000e+00> : vector<2x392xf32>
    %3 = tpu.matmul %2, %1, %cst {dimension_numbers = #tpu.dot_dimension_numbers<[1], [0], [0], [1], [0, 0, 1, 1], [], []>} : vector<2x1024xbf16>, vector<1024x392xbf16>, vector<2x392xf32> -> vector<2x392xf32>
    %c0_3 = arith.constant 0 : index
    %c0_4 = arith.constant 0 : index
    %4 = vector.load %arg6[%c0_3, %c0_4] : memref<1x392xf32, #tpu.memory_space<vmem>>, vector<1x392xf32>
    %5 = vector.broadcast %4 : vector<1x392xf32> to vector<2x392xf32>
    %6 = arith.addf %3, %5 : vector<2x392xf32>
    %cst_5 = arith.constant 0.000000e+00 : f32
    %7 = vector.broadcast %cst_5 : f32 to vector<2x392xf32>
    %8 = arith.cmpf oge, %6, %7 : vector<2x392xf32>
    %cst_6 = arith.constant 0.00999999977 : f32
    %9 = vector.broadcast %cst_6 : f32 to vector<2x392xf32>
    %10 = arith.mulf %9, %6 : vector<2x392xf32>
    %11 = arith.select %8, %6, %10 : vector<2x392xi1>, vector<2x392xf32>
    %c0_7 = arith.constant 0 : index
    %c0_8 = arith.constant 0 : index
    %12 = vector.load %arg2[%c0_7, %c0_8] : memref<392x400xbf16, #tpu.memory_space<vmem>>, vector<392x400xbf16>
    %13 = arith.truncf %11 : vector<2x392xf32> to vector<2x392xbf16>
    %cst_9 = arith.constant dense<0.000000e+00> : vector<2x400xf32>
    %14 = tpu.matmul %13, %12, %cst_9 {dimension_numbers = #tpu.dot_dimension_numbers<[1], [0], [0], [1], [0, 0, 1, 1], [], []>} : vector<2x392xbf16>, vector<392x400xbf16>, vector<2x400xf32> -> vector<2x400xf32>
    %c0_10 = arith.constant 0 : index
    %c0_11 = arith.constant 0 : index
    %15 = vector.load %arg7[%c0_10, %c0_11] : memref<1x400xf32, #tpu.memory_space<vmem>>, vector<1x400xf32>
    %16 = vector.broadcast %15 : vector<1x400xf32> to vector<2x400xf32>
    %17 = arith.addf %14, %16 : vector<2x400xf32>
    %cst_12 = arith.constant 0.000000e+00 : f32
    %18 = vector.broadcast %cst_12 : f32 to vector<2x400xf32>
    %19 = arith.cmpf oge, %17, %18 : vector<2x400xf32>
    %cst_13 = arith.constant 0.00999999977 : f32
    %20 = vector.broadcast %cst_13 : f32 to vector<2x400xf32>
    %21 = arith.mulf %20, %17 : vector<2x400xf32>
    %22 = arith.select %19, %17, %21 : vector<2x400xi1>, vector<2x400xf32>
    %c0_14 = arith.constant 0 : index
    %c0_15 = arith.constant 0 : index
    %23 = vector.load %arg3[%c0_14, %c0_15] : memref<400x32xbf16, #tpu.memory_space<vmem>>, vector<400x32xbf16>
    %24 = arith.truncf %22 : vector<2x400xf32> to vector<2x400xbf16>
    %cst_16 = arith.constant dense<0.000000e+00> : vector<2x32xf32>
    %25 = tpu.matmul %24, %23, %cst_16 {dimension_numbers = #tpu.dot_dimension_numbers<[1], [0], [0], [1], [0, 0, 1, 1], [], []>} : vector<2x400xbf16>, vector<400x32xbf16>, vector<2x32xf32> -> vector<2x32xf32>
    %c0_17 = arith.constant 0 : index
    %c0_18 = arith.constant 0 : index
    %26 = vector.load %arg8[%c0_17, %c0_18] : memref<1x32xf32, #tpu.memory_space<vmem>>, vector<1x32xf32>
    %27 = vector.broadcast %26 : vector<1x32xf32> to vector<2x32xf32>
    %28 = arith.addf %25, %27 : vector<2x32xf32>
    %cst_19 = arith.constant 0.000000e+00 : f32
    %29 = vector.broadcast %cst_19 : f32 to vector<2x32xf32>
    %30 = arith.cmpf oge, %28, %29 : vector<2x32xf32>
    %cst_20 = arith.constant 0.00999999977 : f32
    %31 = vector.broadcast %cst_20 : f32 to vector<2x32xf32>
    %32 = arith.mulf %31, %28 : vector<2x32xf32>
    %33 = arith.select %30, %28, %32 : vector<2x32xi1>, vector<2x32xf32>
    %c0_21 = arith.constant 0 : index
    %c0_22 = arith.constant 0 : index
    %34 = vector.load %arg4[%c0_21, %c0_22] : memref<32x64xbf16, #tpu.memory_space<vmem>>, vector<32x64xbf16>
    %35 = arith.truncf %33 : vector<2x32xf32> to vector<2x32xbf16>
    %cst_23 = arith.constant dense<0.000000e+00> : vector<2x64xf32>
    %36 = tpu.matmul %35, %34, %cst_23 {dimension_numbers = #tpu.dot_dimension_numbers<[1], [0], [0], [1], [0, 0, 1, 1], [], []>} : vector<2x32xbf16>, vector<32x64xbf16>, vector<2x64xf32> -> vector<2x64xf32>
    %c0_24 = arith.constant 0 : index
    %c0_25 = arith.constant 0 : index
    %37 = vector.load %arg9[%c0_24, %c0_25] : memref<1x64xf32, #tpu.memory_space<vmem>>, vector<1x64xf32>
    %38 = vector.broadcast %37 : vector<1x64xf32> to vector<2x64xf32>
    %39 = arith.addf %36, %38 : vector<2x64xf32>
    %40 = math.tanh %39 : vector<2x64xf32>
    %c0_26 = arith.constant 0 : index
    %c0_27 = arith.constant 0 : index
    %41 = vector.load %arg5[%c0_26, %c0_27] : memref<64x128xbf16, #tpu.memory_space<vmem>>, vector<64x128xbf16>
    %42 = arith.truncf %40 : vector<2x64xf32> to vector<2x64xbf16>
    %cst_28 = arith.constant dense<0.000000e+00> : vector<2x128xf32>
    %43 = tpu.matmul %42, %41, %cst_28 {dimension_numbers = #tpu.dot_dimension_numbers<[1], [0], [0], [1], [0, 0, 1, 1], [], []>} : vector<2x64xbf16>, vector<64x128xbf16>, vector<2x128xf32> -> vector<2x128xf32>
    %c0_29 = arith.constant 0 : index
    %c0_30 = arith.constant 0 : index
    %44 = vector.load %arg10[%c0_29, %c0_30] : memref<1x128xf32, #tpu.memory_space<vmem>>, vector<1x128xf32>
    %45 = vector.broadcast %44 : vector<1x128xf32> to vector<2x128xf32>
    %46 = arith.addf %43, %45 : vector<2x128xf32>
    %c0_31 = arith.constant 0 : index
    %c0_32 = arith.constant 0 : index
    %47 = vector.load %arg11[%c0_31, %c0_32] : memref<2x128xf32, #tpu.memory_space<vmem>>, vector<2x128xf32>
    tpu.vector_store %arg11[%c0_31, %c0_32], %46 {strides = array<i32>} : memref<2x128xf32, #tpu.memory_space<vmem>>, vector<2x128xf32>,
    return
  }
}

</mosaic_0001>

<llo_original>
// kernel: _lambda_.1
$region0: #{_lambda_.1}
  #allocation0 [shape = 'u32[]', space=smem, size = 0x4, offset = 0x4, fixed_abs, tag = 'smem constant byte address 0x4 - core index']
  #allocation1 [shape = 'u32[144,128]{1,0:T(1,128)}', space=vmem, size = 0x12000, scoped, tag = 'internal scratch']
  %s0 = inlined_call_operand.vmem [shape: f32[2,1024], index: 0, kind: input, shape index: {}]
  %s1 = inlined_call_operand.vmem [shape: bf16[1024,392], index: 1, kind: input, shape index: {}]
  %s2 = inlined_call_operand.vmem [shape: bf16[392,400], index: 2, kind: input, shape index: {}]
  %s3 = inlined_call_operand.vmem [shape: bf16[400,32], index: 3, kind: input, shape index: {}]
  %s4 = inlined_call_operand.vmem [shape: bf16[32,64], index: 4, kind: input, shape index: {}]
  %s5 = inlined_call_operand.vmem [shape: bf16[64,128], index: 5, kind: input, shape index: {}]
  %s6 = inlined_call_operand.vmem [shape: f32[1,392], index: 6, kind: input, shape index: {}]
  %s7 = inlined_call_operand.vmem [shape: f32[1,400], index: 7, kind: input, shape index: {}]
  %s8 = inlined_call_operand.vmem [shape: f32[1,32], index: 8, kind: input, shape index: {}]
  %s9 = inlined_call_operand.vmem [shape: f32[1,64], index: 9, kind: input, shape index: {}]
  %s10 = inlined_call_operand.vmem [shape: f32[1,128], index: 10, kind: input, shape index: {}]
  %s11 = inlined_call_operand.vmem [shape: f32[2,128], index: 11, kind: output, shape index: {}]
  %s12 = sld [smem:[#allocation0]]
  $region54: #{_lambda_.1} parent=0
    _
  %s14 = ssub.s32 1, %s12
  %s15 = scalar_select 0, %s14, %s12
  // Predicated region
  $region2: #{_lambda_.1} parent=0 // pred_check
    _
  $region3: #{_lambda_.1} parent=0 // pred_check_branch
    %17 = sbr.rel (0) target = $region5
  $region4: #{_lambda_.1} parent=0 // pred_region
    _
  $region5: #{_lambda_.1} parent=0 // pred_fallthru
    _
  // Predicated region
  $region6: #{_lambda_.1} parent=0 // pred_check
    _
  $region7: #{_lambda_.1} parent=0 // pred_check_branch
    %19 = sbr.rel (0) target = $region9
  $region8: #{_lambda_.1} parent=0 // pred_region
    _
  $region9: #{_lambda_.1} parent=0 // pred_fallthru
    _
  // Predicated region
  $region10: #{_lambda_.1} parent=0 // pred_check
    _
  $region11: #{_lambda_.1} parent=0 // pred_check_branch
    %21 = sbr.rel (0) target = $region13
  $region12: #{_lambda_.1} parent=0 // pred_region
    _
  $region13: #{_lambda_.1} parent=0 // pred_fallthru
    _
  // Predicated region
  $region14: #{_lambda_.1} parent=0 // pred_check
    _
  $region15: #{_lambda_.1} parent=0 // pred_check_branch
    %23 = sbr.rel (0) target = $region17
  $region16: #{_lambda_.1} parent=0 // pred_region
    _
  $region17: #{_lambda_.1} parent=0 // pred_fallthru
    _
  // Predicated region
  $region18: #{_lambda_.1} parent=0 // pred_check
    _
  $region19: #{_lambda_.1} parent=0 // pred_check_branch
    %25 = sbr.rel (0) target = $region21
  $region20: #{_lambda_.1} parent=0 // pred_region
    _
  $region21: #{_lambda_.1} parent=0 // pred_fallthru
    _
  // Predicated region
  $region22: #{_lambda_.1} parent=0 // pred_check
    _
  $region23: #{_lambda_.1} parent=0 // pred_check_branch
    %27 = sbr.rel (0) target = $region25
  $region24: #{_lambda_.1} parent=0 // pred_region
    _
  $region25: #{_lambda_.1} parent=0 // pred_fallthru
    _
  // Predicated region
  $region26: #{_lambda_.1} parent=0 // pred_check
    _
  $region27: #{_lambda_.1} parent=0 // pred_check_branch
    %29 = sbr.rel (0) target = $region29
  $region28: #{_lambda_.1} parent=0 // pred_region
    _
  $region29: #{_lambda_.1} parent=0 // pred_fallthru
    _
  // Predicated region
  $region30: #{_lambda_.1} parent=0 // pred_check
    _
  $region31: #{_lambda_.1} parent=0 // pred_check_branch
    %31 = sbr.rel (0) target = $region33
  $region32: #{_lambda_.1} parent=0 // pred_region
    _
  $region33: #{_lambda_.1} parent=0 // pred_fallthru
    _
  // Predicated region
  $region34: #{_lambda_.1} parent=0 // pred_check
    _
  $region35: #{_lambda_.1} parent=0 // pred_check_branch
    %33 = sbr.rel (0) target = $region37
  $region36: #{_lambda_.1} parent=0 // pred_region
    _
  $region37: #{_lambda_.1} parent=0 // pred_fallthru
    _
  // Predicated region
  $region38: #{_lambda_.1} parent=0 // pred_check
    _
  $region39: #{_lambda_.1} parent=0 // pred_check_branch
    %35 = sbr.rel (0) target = $region41
  $region40: #{_lambda_.1} parent=0 // pred_region
    _
  $region41: #{_lambda_.1} parent=0 // pred_fallthru
    _
  // Predicated region
  $region42: #{_lambda_.1} parent=0 // pred_check
    _
  $region43: #{_lambda_.1} parent=0 // pred_check_branch
    %37 = sbr.rel (0) target = $region45
  $region44: #{_lambda_.1} parent=0 // pred_region
    _
  $region45: #{_lambda_.1} parent=0 // pred_fallthru
    _
  %v39 = vld [vmem:[%s0] sm:$0xff]
  %v40 = vld [vmem:[%s0 + $0x8] sm:$0xff]
  %v41 = vld [vmem:[%s1] sm:$0xff]
  %v42 = vld [vmem:[%s1 + $0x8] sm:$0xff]
  %v43 = vld [vmem:[%s1 + $0x10] sm:$0xff]
  %v44 = vld [vmem:[%s1 + $0x18] sm:$0xff]
  %v45 = vld [vmem:[%s1 + $0x20] sm:$0xff]
  %v46 = vld [vmem:[%s1 + $0x28] sm:$0xff]
  %v47 = vld [vmem:[%s1 + $0x30] sm:$0xff]
  %v48 = vld [vmem:[%s1 + $0x38] sm:$0xff]
  %v49 = vld [vmem:[%s1 + $0x40] sm:$0xff]
  %v50 = vld [vmem:[%s1 + $0x48] sm:$0xff]
  %v51 = vld [vmem:[%s1 + $0x50] sm:$0xff]
  %v52 = vld [vmem:[%s1 + $0x58] sm:$0xff]
  %v53 = vld [vmem:[%s1 + $0x60] sm:$0xff]
  %v54 = vld [vmem:[%s1 + $0x68] sm:$0xff]
  %v55 = vld [vmem:[%s1 + $0x70] sm:$0xff]
  %v56 = vld [vmem:[%s1 + $0x78] sm:$0xff]
  %v57 = vld [vmem:[%s1 + $0x80] sm:$0xff]
  %v58 = vld [vmem:[%s1 + $0x88] sm:$0xff]
  %v59 = vld [vmem:[%s1 + $0x90] sm:$0xff]
  %v60 = vld [vmem:[%s1 + $0x98] sm:$0xff]
  %v61 = vld [vmem:[%s1 + $0xa0] sm:$0xff]
  %v62 = vld [vmem:[%s1 + $0xa8] sm:$0xff]
  %v63 = vld [vmem:[%s1 + $0xb0] sm:$0xff]
  %v64 = vld [vmem:[%s1 + $0xb8] sm:$0xff]
  %v65 = vld [vmem:[%s1 + $0xc0] sm:$0xff]
  %v66 = vld [vmem:[%s1 + $0xc8] sm:$0xff]
  %v67 = vld [vmem:[%s1 + $0xd0] sm:$0xff]
  %v68 = vld [vmem:[%s1 + $0xd8] sm:$0xff]
  %v69 = vld [vmem:[%s1 + $0xe0] sm:$0xff]
  %v70 = vld [vmem:[%s1 + $0xe8] sm:$0xff]
  %v71 = vld [vmem:[%s1 + $0xf0] sm:$0xff]
  %v72 = vld [vmem:[%s1 + $0xf8] sm:$0xff]
  %v73 = vld [vmem:[%s1 + $0x100] sm:$0xff]
  %v74 = vld [vmem:[%s1 + $0x108] sm:$0xff]
  %v75 = vld [vmem:[%s1 + $0x110] sm:$0xff]
  %v76 = vld [vmem:[%s1 + $0x118] sm:$0xff]
  %v77 = vld [vmem:[%s1 + $0x120] sm:$0xff]
  %v78 = vld [vmem:[%s1 + $0x128] sm:$0xff]
  %v79 = vld [vmem:[%s1 + $0x130] sm:$0xff]
  %v80 = vld [vmem:[%s1 + $0x138] sm:$0xff]
  %v81 = vld [vmem:[%s1 + $0x140] sm:$0xff]
  %v82 = vld [vmem:[%s1 + $0x148] sm:$0xff]
  %v83 = vld [vmem:[%s1 + $0x150] sm:$0xff]
  %v84 = vld [vmem:[%s1 + $0x158] sm:$0xff]
  %v85 = vld [vmem:[%s1 + $0x160] sm:$0xff]
  %v86 = vld [vmem:[%s1 + $0x168] sm:$0xff]
  %v87 = vld [vmem:[%s1 + $0x170] sm:$0xff]
  %v88 = vld [vmem:[%s1 + $0x178] sm:$0xff]
  %v89 = vld [vmem:[%s1 + $0x180] sm:$0xff]
  %v90 = vld [vmem:[%s1 + $0x188] sm:$0xff]
  %v91 = vld [vmem:[%s1 + $0x190] sm:$0xff]
  %v92 = vld [vmem:[%s1 + $0x198] sm:$0xff]
  %v93 = vld [vmem:[%s1 + $0x1a0] sm:$0xff]
  %v94 = vld [vmem:[%s1 + $0x1a8] sm:$0xff]
  %v95 = vld [vmem:[%s1 + $0x1b0] sm:$0xff]
  %v96 = vld [vmem:[%s1 + $0x1b8] sm:$0xff]
  %v97 = vld [vmem:[%s1 + $0x1c0] sm:$0xff]
  %v98 = vld [vmem:[%s1 + $0x1c8] sm:$0xff]
  %v99 = vld [vmem:[%s1 + $0x1d0] sm:$0xff]
  %v100 = vld [vmem:[%s1 + $0x1d8] sm:$0xff]
  %v101 = vld [vmem:[%s1 + $0x1e0] sm:$0xff]
  %v102 = vld [vmem:[%s1 + $0x1e8] sm:$0xff]
  %v103 = vld [vmem:[%s1 + $0x1f0] sm:$0xff]
  %v104 = vld [vmem:[%s1 + $0x1f8] sm:$0xff]
  %v105 = vld [vmem:[%s1 + $0x200] sm:$0xff]
  %v106 = vld [vmem:[%s1 + $0x208] sm:$0xff]
  %v107 = vld [vmem:[%s1 + $0x210] sm:$0xff]
  %v108 = vld [vmem:[%s1 + $0x218] sm:$0xff]
  %v109 = vld [vmem:[%s1 + $0x220] sm:$0xff]
  %v110 = vld [vmem:[%s1 + $0x228] sm:$0xff]
  %v111 = vld [vmem:[%s1 + $0x230] sm:$0xff]
  %v112 = vld [vmem:[%s1 + $0x238] sm:$0xff]
  %v113 = vld [vmem:[%s1 + $0x240] sm:$0xff]
  %v114 = vld [vmem:[%s1 + $0x248] sm:$0xff]
  %v115 = vld [vmem:[%s1 + $0x250] sm:$0xff]
  %v116 = vld [vmem:[%s1 + $0x258] sm:$0xff]
  %v117 = vld [vmem:[%s1 + $0x260] sm:$0xff]
  %v118 = vld [vmem:[%s1 + $0x268] sm:$0xff]
  %v119 = vld [vmem:[%s1 + $0x270] sm:$0xff]
  %v120 = vld [vmem:[%s1 + $0x278] sm:$0xff]
  %v121 = vld [vmem:[%s1 + $0x280] sm:$0xff]
  %v122 = vld [vmem:[%s1 + $0x288] sm:$0xff]
  %v123 = vld [vmem:[%s1 + $0x290] sm:$0xff]
  %v124 = vld [vmem:[%s1 + $0x298] sm:$0xff]
  %v125 = vld [vmem:[%s1 + $0x2a0] sm:$0xff]
  %v126 = vld [vmem:[%s1 + $0x2a8] sm:$0xff]
  %v127 = vld [vmem:[%s1 + $0x2b0] sm:$0xff]
  %v128 = vld [vmem:[%s1 + $0x2b8] sm:$0xff]
  %v129 = vld [vmem:[%s1 + $0x2c0] sm:$0xff]
  %v130 = vld [vmem:[%s1 + $0x2c8] sm:$0xff]
  %v131 = vld [vmem:[%s1 + $0x2d0] sm:$0xff]
  %v132 = vld [vmem:[%s1 + $0x2d8] sm:$0xff]
  %v133 = vld [vmem:[%s1 + $0x2e0] sm:$0xff]
  %v134 = vld [vmem:[%s1 + $0x2e8] sm:$0xff]
  %v135 = vld [vmem:[%s1 + $0x2f0] sm:$0xff]
  %v136 = vld [vmem:[%s1 + $0x2f8] sm:$0xff]
  %v137 = vld [vmem:[%s1 + $0x300] sm:$0xff]
  %v138 = vld [vmem:[%s1 + $0x308] sm:$0xff]
  %v139 = vld [vmem:[%s1 + $0x310] sm:$0xff]
  %v140 = vld [vmem:[%s1 + $0x318] sm:$0xff]
  %v141 = vld [vmem:[%s1 + $0x320] sm:$0xff]
  %v142 = vld [vmem:[%s1 + $0x328] sm:$0xff]
  %v143 = vld [vmem:[%s1 + $0x330] sm:$0xff]
  %v144 = vld [vmem:[%s1 + $0x338] sm:$0xff]
  %v145 = vld [vmem:[%s1 + $0x340] sm:$0xff]
  %v146 = vld [vmem:[%s1 + $0x348] sm:$0xff]
  %v147 = vld [vmem:[%s1 + $0x350] sm:$0xff]
  %v148 = vld [vmem:[%s1 + $0x358] sm:$0xff]
  %v149 = vld [vmem:[%s1 + $0x360] sm:$0xff]
  %v150 = vld [vmem:[%s1 + $0x368] sm:$0xff]
  %v151 = vld [vmem:[%s1 + $0x370] sm:$0xff]
  %v152 = vld [vmem:[%s1 + $0x378] sm:$0xff]
  %v153 = vld [vmem:[%s1 + $0x380] sm:$0xff]
  %v154 = vld [vmem:[%s1 + $0x388] sm:$0xff]
  %v155 = vld [vmem:[%s1 + $0x390] sm:$0xff]
  %v156 = vld [vmem:[%s1 + $0x398] sm:$0xff]
  %v157 = vld [vmem:[%s1 + $0x3a0] sm:$0xff]
  %v158 = vld [vmem:[%s1 + $0x3a8] sm:$0xff]
  %v159 = vld [vmem:[%s1 + $0x3b0] sm:$0xff]
  %v160 = vld [vmem:[%s1 + $0x3b8] sm:$0xff]
  %v161 = vld [vmem:[%s1 + $0x3c0] sm:$0xff]
  %v162 = vld [vmem:[%s1 + $0x3c8] sm:$0xff]
  %v163 = vld [vmem:[%s1 + $0x3d0] sm:$0xff]
  %v164 = vld [vmem:[%s1 + $0x3d8] sm:$0xff]
  %v165 = vld [vmem:[%s1 + $0x3e0] sm:$0xff]
  %v166 = vld [vmem:[%s1 + $0x3e8] sm:$0xff]
  %v167 = vld [vmem:[%s1 + $0x3f0] sm:$0xff]
  %v168 = vld [vmem:[%s1 + $0x3f8] sm:$0xff]
  %v169 = vld [vmem:[%s1 + $0x400] sm:$0xff]
  %v170 = vld [vmem:[%s1 + $0x408] sm:$0xff]
  %v171 = vld [vmem:[%s1 + $0x410] sm:$0xff]
  %v172 = vld [vmem:[%s1 + $0x418] sm:$0xff]
  %v173 = vld [vmem:[%s1 + $0x420] sm:$0xff]
  %v174 = vld [vmem:[%s1 + $0x428] sm:$0xff]
  %v175 = vld [vmem:[%s1 + $0x430] sm:$0xff]
  %v176 = vld [vmem:[%s1 + $0x438] sm:$0xff]
  %v177 = vld [vmem:[%s1 + $0x440] sm:$0xff]
  %v178 = vld [vmem:[%s1 + $0x448] sm:$0xff]
  %v179 = vld [vmem:[%s1 + $0x450] sm:$0xff]
  %v180 = vld [vmem:[%s1 + $0x458] sm:$0xff]
  %v181 = vld [vmem:[%s1 + $0x460] sm:$0xff]
  %v182 = vld [vmem:[%s1 + $0x468] sm:$0xff]
  %v183 = vld [vmem:[%s1 + $0x470] sm:$0xff]
  %v184 = vld [vmem:[%s1 + $0x478] sm:$0xff]
  %v185 = vld [vmem:[%s1 + $0x480] sm:$0xff]
  %v186 = vld [vmem:[%s1 + $0x488] sm:$0xff]
  %v187 = vld [vmem:[%s1 + $0x490] sm:$0xff]
  %v188 = vld [vmem:[%s1 + $0x498] sm:$0xff]
  %v189 = vld [vmem:[%s1 + $0x4a0] sm:$0xff]
  %v190 = vld [vmem:[%s1 + $0x4a8] sm:$0xff]
  %v191 = vld [vmem:[%s1 + $0x4b0] sm:$0xff]
  %v192 = vld [vmem:[%s1 + $0x4b8] sm:$0xff]
  %v193 = vld [vmem:[%s1 + $0x4c0] sm:$0xff]
  %v194 = vld [vmem:[%s1 + $0x4c8] sm:$0xff]
  %v195 = vld [vmem:[%s1 + $0x4d0] sm:$0xff]
  %v196 = vld [vmem:[%s1 + $0x4d8] sm:$0xff]
  %v197 = vld [vmem:[%s1 + $0x4e0] sm:$0xff]
  %v198 = vld [vmem:[%s1 + $0x4e8] sm:$0xff]
  %v199 = vld [vmem:[%s1 + $0x4f0] sm:$0xff]
  %v200 = vld [vmem:[%s1 + $0x4f8] sm:$0xff]
  %v201 = vld [vmem:[%s1 + $0x500] sm:$0xff]
  %v202 = vld [vmem:[%s1 + $0x508] sm:$0xff]
  %v203 = vld [vmem:[%s1 + $0x510] sm:$0xff]
  %v204 = vld [vmem:[%s1 + $0x518] sm:$0xff]
  %v205 = vld [vmem:[%s1 + $0x520] sm:$0xff]
  %v206 = vld [vmem:[%s1 + $0x528] sm:$0xff]
  %v207 = vld [vmem:[%s1 + $0x530] sm:$0xff]
  %v208 = vld [vmem:[%s1 + $0x538] sm:$0xff]
  %v209 = vld [vmem:[%s1 + $0x540] sm:$0xff]
  %v210 = vld [vmem:[%s1 + $0x548] sm:$0xff]
  %v211 = vld [vmem:[%s1 + $0x550] sm:$0xff]
  %v212 = vld [vmem:[%s1 + $0x558] sm:$0xff]
  %v213 = vld [vmem:[%s1 + $0x560] sm:$0xff]
  %v214 = vld [vmem:[%s1 + $0x568] sm:$0xff]
  %v215 = vld [vmem:[%s1 + $0x570] sm:$0xff]
  %v216 = vld [vmem:[%s1 + $0x578] sm:$0xff]
  %v217 = vld [vmem:[%s1 + $0x580] sm:$0xff]
  %v218 = vld [vmem:[%s1 + $0x588] sm:$0xff]
  %v219 = vld [vmem:[%s1 + $0x590] sm:$0xff]
  %v220 = vld [vmem:[%s1 + $0x598] sm:$0xff]
  %v221 = vld [vmem:[%s1 + $0x5a0] sm:$0xff]
  %v222 = vld [vmem:[%s1 + $0x5a8] sm:$0xff]
  %v223 = vld [vmem:[%s1 + $0x5b0] sm:$0xff]
  %v224 = vld [vmem:[%s1 + $0x5b8] sm:$0xff]
  %v225 = vld [vmem:[%s1 + $0x5c0] sm:$0xff]
  %v226 = vld [vmem:[%s1 + $0x5c8] sm:$0xff]
  %v227 = vld [vmem:[%s1 + $0x5d0] sm:$0xff]
  %v228 = vld [vmem:[%s1 + $0x5d8] sm:$0xff]
  %v229 = vld [vmem:[%s1 + $0x5e0] sm:$0xff]
  %v230 = vld [vmem:[%s1 + $0x5e8] sm:$0xff]
  %v231 = vld [vmem:[%s1 + $0x5f0] sm:$0xff]
  %v232 = vld [vmem:[%s1 + $0x5f8] sm:$0xff]
  %v233 = vld [vmem:[%s1 + $0x600] sm:$0xff]
  %v234 = vld [vmem:[%s1 + $0x608] sm:$0xff]
  %v235 = vld [vmem:[%s1 + $0x610] sm:$0xff]
  %v236 = vld [vmem:[%s1 + $0x618] sm:$0xff]
  %v237 = vld [vmem:[%s1 + $0x620] sm:$0xff]
  %v238 = vld [vmem:[%s1 + $0x628] sm:$0xff]
  %v239 = vld [vmem:[%s1 + $0x630] sm:$0xff]
  %v240 = vld [vmem:[%s1 + $0x638] sm:$0xff]
  %v241 = vld [vmem:[%s1 + $0x640] sm:$0xff]
  %v242 = vld [vmem:[%s1 + $0x648] sm:$0xff]
  %v243 = vld [vmem:[%s1 + $0x650] sm:$0xff]
  %v244 = vld [vmem:[%s1 + $0x658] sm:$0xff]
  %v245 = vld [vmem:[%s1 + $0x660] sm:$0xff]
  %v246 = vld [vmem:[%s1 + $0x668] sm:$0xff]
  %v247 = vld [vmem:[%s1 + $0x670] sm:$0xff]
  %v248 = vld [vmem:[%s1 + $0x678] sm:$0xff]
  %v249 = vld [vmem:[%s1 + $0x680] sm:$0xff]
  %v250 = vld [vmem:[%s1 + $0x688] sm:$0xff]
  %v251 = vld [vmem:[%s1 + $0x690] sm:$0xff]
  %v252 = vld [vmem:[%s1 + $0x698] sm:$0xff]
  %v253 = vld [vmem:[%s1 + $0x6a0] sm:$0xff]
  %v254 = vld [vmem:[%s1 + $0x6a8] sm:$0xff]
  %v255 = vld [vmem:[%s1 + $0x6b0] sm:$0xff]
  %v256 = vld [vmem:[%s1 + $0x6b8] sm:$0xff]
  %v257 = vld [vmem:[%s1 + $0x6c0] sm:$0xff]
  %v258 = vld [vmem:[%s1 + $0x6c8] sm:$0xff]
  %v259 = vld [vmem:[%s1 + $0x6d0] sm:$0xff]
  %v260 = vld [vmem:[%s1 + $0x6d8] sm:$0xff]
  %v261 = vld [vmem:[%s1 + $0x6e0] sm:$0xff]
  %v262 = vld [vmem:[%s1 + $0x6e8] sm:$0xff]
  %v263 = vld [vmem:[%s1 + $0x6f0] sm:$0xff]
  %v264 = vld [vmem:[%s1 + $0x6f8] sm:$0xff]
  %v265 = vld [vmem:[%s1 + $0x700] sm:$0xff]
  %v266 = vld [vmem:[%s1 + $0x708] sm:$0xff]
  %v267 = vld [vmem:[%s1 + $0x710] sm:$0xff]
  %v268 = vld [vmem:[%s1 + $0x718] sm:$0xff]
  %v269 = vld [vmem:[%s1 + $0x720] sm:$0xff]
  %v270 = vld [vmem:[%s1 + $0x728] sm:$0xff]
  %v271 = vld [vmem:[%s1 + $0x730] sm:$0xff]
  %v272 = vld [vmem:[%s1 + $0x738] sm:$0xff]
  %v273 = vld [vmem:[%s1 + $0x740] sm:$0xff]
  %v274 = vld [vmem:[%s1 + $0x748] sm:$0xff]
  %v275 = vld [vmem:[%s1 + $0x750] sm:$0xff]
  %v276 = vld [vmem:[%s1 + $0x758] sm:$0xff]
  %v277 = vld [vmem:[%s1 + $0x760] sm:$0xff]
  %v278 = vld [vmem:[%s1 + $0x768] sm:$0xff]
  %v279 = vld [vmem:[%s1 + $0x770] sm:$0xff]
  %v280 = vld [vmem:[%s1 + $0x778] sm:$0xff]
  %v281 = vld [vmem:[%s1 + $0x780] sm:$0xff]
  %v282 = vld [vmem:[%s1 + $0x788] sm:$0xff]
  %v283 = vld [vmem:[%s1 + $0x790] sm:$0xff]
  %v284 = vld [vmem:[%s1 + $0x798] sm:$0xff]
  %v285 = vld [vmem:[%s1 + $0x7a0] sm:$0xff]
  %v286 = vld [vmem:[%s1 + $0x7a8] sm:$0xff]
  %v287 = vld [vmem:[%s1 + $0x7b0] sm:$0xff]
  %v288 = vld [vmem:[%s1 + $0x7b8] sm:$0xff]
  %v289 = vld [vmem:[%s1 + $0x7c0] sm:$0xff]
  %v290 = vld [vmem:[%s1 + $0x7c8] sm:$0xff]
  %v291 = vld [vmem:[%s1 + $0x7d0] sm:$0xff]
  %v292 = vld [vmem:[%s1 + $0x7d8] sm:$0xff]
  %v293 = vld [vmem:[%s1 + $0x7e0] sm:$0xff]
  %v294 = vld [vmem:[%s1 + $0x7e8] sm:$0xff]
  %v295 = vld [vmem:[%s1 + $0x7f0] sm:$0xff]
  %v296 = vld [vmem:[%s1 + $0x7f8] sm:$0xff]
  %v299 = vcombine.high %v39, %v39
  %v301 = vunpack.c.l.s4 1983009808
  %v302 = vunpack.c.0.s8 %v301
  %v303 = vlaneseq
  %v304 = vshrl.u32 %v303, 7
  %v305 = vsub.s32 %v302, %v304
  %v306 = vrot.slane %v39, %v305
  %v308 = vunpack.c.l.s4 1983009808
  %v309 = vunpack.c.0.s8 %v308
  %v310 = vlaneseq
  %v311 = vshrl.u32 %v310, 7
  %v312 = vsub.s32 %v309, %v311
  %v313 = vrot.slane %v299, %v312
  %v314 = vcombine.high %v306, %v306
  %v315 = vcombine.high %v313, %v313
  %v316 = vcombine.high %v40, %v40
  %v318 = vunpack.c.l.s4 1983009808
  %v319 = vunpack.c.0.s8 %v318
  %v320 = vlaneseq
  %v321 = vshrl.u32 %v320, 7
  %v322 = vsub.s32 %v319, %v321
  %v323 = vrot.slane %v40, %v322
  %v325 = vunpack.c.l.s4 1983009808
  %v326 = vunpack.c.0.s8 %v325
  %v327 = vlaneseq
  %v328 = vshrl.u32 %v327, 7
  %v329 = vsub.s32 %v326, %v328
  %v330 = vrot.slane %v316, %v329
  %v331 = vcombine.high %v323, %v323
  %v332 = vcombine.high %v330, %v330
  %v341 = vpack.c.bf16 %v306, %v306
  %v342 = vpack.c.bf16 %v314, %v314
  %v343 = vpack.c.bf16 %v313, %v313
  %v344 = vpack.c.bf16 %v315, %v315
  %v345 = vpack.c.bf16 %v323, %v323
  %v346 = vpack.c.bf16 %v331, %v331
  %v347 = vpack.c.bf16 %v330, %v330
  %v348 = vpack.c.bf16 %v332, %v332
  %v349 = vld [vmem:[%s6] sm:$0xf]
  %v351 = vlaneseq
  %v352 = vshrl.u32 %v351, 7
  %v353 = vsub.s32 0, %v352
  %v354 = vrot.slane %v349, %v353
  %v355 = vlaneseq
  %v356 = vshrl.u32 %v355, 7
  %v357 = vsub.s32 1, %v356
  %v358 = vrot.slane %v349, %v357
  %v359 = vlaneseq
  %v360 = vshrl.u32 %v359, 7
  %v361 = vsub.s32 2, %v360
  %v362 = vrot.slane %v349, %v361
  %v363 = vlaneseq
  %v364 = vshrl.u32 %v363, 7
  %v365 = vsub.s32 3, %v364
  %v366 = vrot.slane %v349, %v365
  %v627 = vunpack.c.l.b16 %v41
  %v628 = vunpack.c.h.b16 %v41
  %v629 = vunpack.c.l.b16 %v42
  %v630 = vunpack.c.h.b16 %v42
  %v631 = vunpack.c.l.b16 %v43
  %v632 = vunpack.c.h.b16 %v43
  %v633 = vunpack.c.l.b16 %v44
  %v634 = vunpack.c.h.b16 %v44
  %v635 = vunpack.c.l.b16 %v45
  %v636 = vunpack.c.h.b16 %v45
  %v637 = vunpack.c.l.b16 %v46
  %v638 = vunpack.c.h.b16 %v46
  %v639 = vunpack.c.l.b16 %v47
  %v640 = vunpack.c.h.b16 %v47
  %v641 = vunpack.c.l.b16 %v48
  %v642 = vunpack.c.h.b16 %v48
  %v643 = vunpack.c.l.b16 %v49
  %v644 = vunpack.c.h.b16 %v49
  %v645 = vunpack.c.l.b16 %v50
  %v646 = vunpack.c.h.b16 %v50
  %v647 = vunpack.c.l.b16 %v51
  %v648 = vunpack.c.h.b16 %v51
  %v649 = vunpack.c.l.b16 %v52
  %v650 = vunpack.c.h.b16 %v52
  %v651 = vunpack.c.l.b16 %v53
  %v652 = vunpack.c.h.b16 %v53
  %v653 = vunpack.c.l.b16 %v54
  %v654 = vunpack.c.h.b16 %v54
  %v655 = vunpack.c.l.b16 %v55
  %v656 = vunpack.c.h.b16 %v55
  %v657 = vunpack.c.l.b16 %v56
  %v658 = vunpack.c.h.b16 %v56
  %v659 = vunpack.c.l.b16 %v57
  %v660 = vunpack.c.h.b16 %v57
  %v661 = vunpack.c.l.b16 %v58
  %v662 = vunpack.c.h.b16 %v58
  %v663 = vunpack.c.l.b16 %v59
  %v664 = vunpack.c.h.b16 %v59
  %v665 = vunpack.c.l.b16 %v60
  %v666 = vunpack.c.h.b16 %v60
  %v667 = vunpack.c.l.b16 %v61
  %v668 = vunpack.c.h.b16 %v61
  %v669 = vunpack.c.l.b16 %v62
  %v670 = vunpack.c.h.b16 %v62
  %v671 = vunpack.c.l.b16 %v63
  %v672 = vunpack.c.h.b16 %v63
  %v673 = vunpack.c.l.b16 %v64
  %v674 = vunpack.c.h.b16 %v64
  %v675 = vunpack.c.l.b16 %v65
  %v676 = vunpack.c.h.b16 %v65
  %v677 = vunpack.c.l.b16 %v66
  %v678 = vunpack.c.h.b16 %v66
  %v679 = vunpack.c.l.b16 %v67
  %v680 = vunpack.c.h.b16 %v67
  %v681 = vunpack.c.l.b16 %v68
  %v682 = vunpack.c.h.b16 %v68
  %v683 = vunpack.c.l.b16 %v69
  %v684 = vunpack.c.h.b16 %v69
  %v685 = vunpack.c.l.b16 %v70
  %v686 = vunpack.c.h.b16 %v70
  %v687 = vunpack.c.l.b16 %v71
  %v688 = vunpack.c.h.b16 %v71
  %v689 = vunpack.c.l.b16 %v72
  %v690 = vunpack.c.h.b16 %v72
  %v691 = vunpack.c.l.b16 %v73
  %v692 = vunpack.c.h.b16 %v73
  %v693 = vunpack.c.l.b16 %v74
  %v694 = vunpack.c.h.b16 %v74
  %v695 = vunpack.c.l.b16 %v75
  %v696 = vunpack.c.h.b16 %v75
  %v697 = vunpack.c.l.b16 %v76
  %v698 = vunpack.c.h.b16 %v76
  %v699 = vunpack.c.l.b16 %v77
  %v700 = vunpack.c.h.b16 %v77
  %v701 = vunpack.c.l.b16 %v78
  %v702 = vunpack.c.h.b16 %v78
  %v703 = vunpack.c.l.b16 %v79
  %v704 = vunpack.c.h.b16 %v79
  %v705 = vunpack.c.l.b16 %v80
  %v706 = vunpack.c.h.b16 %v80
  %v707 = vunpack.c.l.b16 %v81
  %v708 = vunpack.c.h.b16 %v81
  %v709 = vunpack.c.l.b16 %v82
  %v710 = vunpack.c.h.b16 %v82
  %v711 = vunpack.c.l.b16 %v83
  %v712 = vunpack.c.h.b16 %v83
  %v713 = vunpack.c.l.b16 %v84
  %v714 = vunpack.c.h.b16 %v84
  %v715 = vunpack.c.l.b16 %v85
  %v716 = vunpack.c.h.b16 %v85
  %v717 = vunpack.c.l.b16 %v86
  %v718 = vunpack.c.h.b16 %v86
  %v719 = vunpack.c.l.b16 %v87
  %v720 = vunpack.c.h.b16 %v87
  %v721 = vunpack.c.l.b16 %v88
  %v722 = vunpack.c.h.b16 %v88
  %v723 = vunpack.c.l.b16 %v89
  %v724 = vunpack.c.h.b16 %v89
  %v725 = vunpack.c.l.b16 %v90
  %v726 = vunpack.c.h.b16 %v90
  %v727 = vunpack.c.l.b16 %v91
  %v728 = vunpack.c.h.b16 %v91
  %v729 = vunpack.c.l.b16 %v92
  %v730 = vunpack.c.h.b16 %v92
  %v731 = vunpack.c.l.b16 %v93
  %v732 = vunpack.c.h.b16 %v93
  %v733 = vunpack.c.l.b16 %v94
  %v734 = vunpack.c.h.b16 %v94
  %v735 = vunpack.c.l.b16 %v95
  %v736 = vunpack.c.h.b16 %v95
  %v737 = vunpack.c.l.b16 %v96
  %v738 = vunpack.c.h.b16 %v96
  %v739 = vunpack.c.l.b16 %v97
  %v740 = vunpack.c.h.b16 %v97
  %v741 = vunpack.c.l.b16 %v98
  %v742 = vunpack.c.h.b16 %v98
  %v743 = vunpack.c.l.b16 %v99
  %v744 = vunpack.c.h.b16 %v99
  %v745 = vunpack.c.l.b16 %v100
  %v746 = vunpack.c.h.b16 %v100
  %v747 = vunpack.c.l.b16 %v101
  %v748 = vunpack.c.h.b16 %v101
  %v749 = vunpack.c.l.b16 %v102
  %v750 = vunpack.c.h.b16 %v102
  %v751 = vunpack.c.l.b16 %v103
  %v752 = vunpack.c.h.b16 %v103
  %v753 = vunpack.c.l.b16 %v104
  %v754 = vunpack.c.h.b16 %v104
  %v755 = vunpack.c.l.b16 %v105
  %v756 = vunpack.c.h.b16 %v105
  %v757 = vunpack.c.l.b16 %v106
  %v758 = vunpack.c.h.b16 %v106
  %v759 = vunpack.c.l.b16 %v107
  %v760 = vunpack.c.h.b16 %v107
  %v761 = vunpack.c.l.b16 %v108
  %v762 = vunpack.c.h.b16 %v108
  %v763 = vunpack.c.l.b16 %v109
  %v764 = vunpack.c.h.b16 %v109
  %v765 = vunpack.c.l.b16 %v110
  %v766 = vunpack.c.h.b16 %v110
  %v767 = vunpack.c.l.b16 %v111
  %v768 = vunpack.c.h.b16 %v111
  %v769 = vunpack.c.l.b16 %v112
  %v770 = vunpack.c.h.b16 %v112
  %v771 = vunpack.c.l.b16 %v113
  %v772 = vunpack.c.h.b16 %v113
  %v773 = vunpack.c.l.b16 %v114
  %v774 = vunpack.c.h.b16 %v114
  %v775 = vunpack.c.l.b16 %v115
  %v776 = vunpack.c.h.b16 %v115
  %v777 = vunpack.c.l.b16 %v116
  %v778 = vunpack.c.h.b16 %v116
  %v779 = vunpack.c.l.b16 %v117
  %v780 = vunpack.c.h.b16 %v117
  %v781 = vunpack.c.l.b16 %v118
  %v782 = vunpack.c.h.b16 %v118
  %v783 = vunpack.c.l.b16 %v119
  %v784 = vunpack.c.h.b16 %v119
  %v785 = vunpack.c.l.b16 %v120
  %v786 = vunpack.c.h.b16 %v120
  %v787 = vunpack.c.l.b16 %v121
  %v788 = vunpack.c.h.b16 %v121
  %v789 = vunpack.c.l.b16 %v122
  %v790 = vunpack.c.h.b16 %v122
  %v791 = vunpack.c.l.b16 %v123
  %v792 = vunpack.c.h.b16 %v123
  %v793 = vunpack.c.l.b16 %v124
  %v794 = vunpack.c.h.b16 %v124
  %v795 = vunpack.c.l.b16 %v125
  %v796 = vunpack.c.h.b16 %v125
  %v797 = vunpack.c.l.b16 %v126
  %v798 = vunpack.c.h.b16 %v126
  %v799 = vunpack.c.l.b16 %v127
  %v800 = vunpack.c.h.b16 %v127
  %v801 = vunpack.c.l.b16 %v128
  %v802 = vunpack.c.h.b16 %v128
  %v803 = vunpack.c.l.b16 %v129
  %v804 = vunpack.c.h.b16 %v129
  %v805 = vunpack.c.l.b16 %v130
  %v806 = vunpack.c.h.b16 %v130
  %v807 = vunpack.c.l.b16 %v131
  %v808 = vunpack.c.h.b16 %v131
  %v809 = vunpack.c.l.b16 %v132
  %v810 = vunpack.c.h.b16 %v132
  %v811 = vunpack.c.l.b16 %v133
  %v812 = vunpack.c.h.b16 %v133
  %v813 = vunpack.c.l.b16 %v134
  %v814 = vunpack.c.h.b16 %v134
  %v815 = vunpack.c.l.b16 %v135
  %v816 = vunpack.c.h.b16 %v135
  %v817 = vunpack.c.l.b16 %v136
  %v818 = vunpack.c.h.b16 %v136
  %v819 = vunpack.c.l.b16 %v137
  %v820 = vunpack.c.h.b16 %v137
  %v821 = vunpack.c.l.b16 %v138
  %v822 = vunpack.c.h.b16 %v138
  %v823 = vunpack.c.l.b16 %v139
  %v824 = vunpack.c.h.b16 %v139
  %v825 = vunpack.c.l.b16 %v140
  %v826 = vunpack.c.h.b16 %v140
  %v827 = vunpack.c.l.b16 %v141
  %v828 = vunpack.c.h.b16 %v141
  %v829 = vunpack.c.l.b16 %v142
  %v830 = vunpack.c.h.b16 %v142
  %v831 = vunpack.c.l.b16 %v143
  %v832 = vunpack.c.h.b16 %v143
  %v833 = vunpack.c.l.b16 %v144
  %v834 = vunpack.c.h.b16 %v144
  %v835 = vunpack.c.l.b16 %v145
  %v836 = vunpack.c.h.b16 %v145
  %v837 = vunpack.c.l.b16 %v146
  %v838 = vunpack.c.h.b16 %v146
  %v839 = vunpack.c.l.b16 %v147
  %v840 = vunpack.c.h.b16 %v147
  %v841 = vunpack.c.l.b16 %v148
  %v842 = vunpack.c.h.b16 %v148
  %v843 = vunpack.c.l.b16 %v149
  %v844 = vunpack.c.h.b16 %v149
  %v845 = vunpack.c.l.b16 %v150
  %v846 = vunpack.c.h.b16 %v150
  %v847 = vunpack.c.l.b16 %v151
  %v848 = vunpack.c.h.b16 %v151
  %v849 = vunpack.c.l.b16 %v152
  %v850 = vunpack.c.h.b16 %v152
  %v851 = vunpack.c.l.b16 %v153
  %v852 = vunpack.c.h.b16 %v153
  %v853 = vunpack.c.l.b16 %v154
  %v854 = vunpack.c.h.b16 %v154
  %v855 = vunpack.c.l.b16 %v155
  %v856 = vunpack.c.h.b16 %v155
  %v857 = vunpack.c.l.b16 %v156
  %v858 = vunpack.c.h.b16 %v156
  %v859 = vunpack.c.l.b16 %v157
  %v860 = vunpack.c.h.b16 %v157
  %v861 = vunpack.c.l.b16 %v158
  %v862 = vunpack.c.h.b16 %v158
  %v863 = vunpack.c.l.b16 %v159
  %v864 = vunpack.c.h.b16 %v159
  %v865 = vunpack.c.l.b16 %v160
  %v866 = vunpack.c.h.b16 %v160
  %v867 = vunpack.c.l.b16 %v161
  %v868 = vunpack.c.h.b16 %v161
  %v869 = vunpack.c.l.b16 %v162
  %v870 = vunpack.c.h.b16 %v162
  %v871 = vunpack.c.l.b16 %v163
  %v872 = vunpack.c.h.b16 %v163
  %v873 = vunpack.c.l.b16 %v164
  %v874 = vunpack.c.h.b16 %v164
  %v875 = vunpack.c.l.b16 %v165
  %v876 = vunpack.c.h.b16 %v165
  %v877 = vunpack.c.l.b16 %v166
  %v878 = vunpack.c.h.b16 %v166
  %v879 = vunpack.c.l.b16 %v167
  %v880 = vunpack.c.h.b16 %v167
  %v881 = vunpack.c.l.b16 %v168
  %v882 = vunpack.c.h.b16 %v168
  %v883 = vunpack.c.l.b16 %v169
  %v884 = vunpack.c.h.b16 %v169
  %v885 = vunpack.c.l.b16 %v170
  %v886 = vunpack.c.h.b16 %v170
  %v887 = vunpack.c.l.b16 %v171
  %v888 = vunpack.c.h.b16 %v171
  %v889 = vunpack.c.l.b16 %v172
  %v890 = vunpack.c.h.b16 %v172
  %v891 = vunpack.c.l.b16 %v173
  %v892 = vunpack.c.h.b16 %v173
  %v893 = vunpack.c.l.b16 %v174
  %v894 = vunpack.c.h.b16 %v174
  %v895 = vunpack.c.l.b16 %v175
  %v896 = vunpack.c.h.b16 %v175
  %v897 = vunpack.c.l.b16 %v176
  %v898 = vunpack.c.h.b16 %v176
  %v899 = vunpack.c.l.b16 %v177
  %v900 = vunpack.c.h.b16 %v177
  %v901 = vunpack.c.l.b16 %v178
  %v902 = vunpack.c.h.b16 %v178
  %v903 = vunpack.c.l.b16 %v179
  %v904 = vunpack.c.h.b16 %v179
  %v905 = vunpack.c.l.b16 %v180
  %v906 = vunpack.c.h.b16 %v180
  %v907 = vunpack.c.l.b16 %v181
  %v908 = vunpack.c.h.b16 %v181
  %v909 = vunpack.c.l.b16 %v182
  %v910 = vunpack.c.h.b16 %v182
  %v911 = vunpack.c.l.b16 %v183
  %v912 = vunpack.c.h.b16 %v183
  %v913 = vunpack.c.l.b16 %v184
  %v914 = vunpack.c.h.b16 %v184
  %v915 = vunpack.c.l.b16 %v185
  %v916 = vunpack.c.h.b16 %v185
  %v917 = vunpack.c.l.b16 %v186
  %v918 = vunpack.c.h.b16 %v186
  %v919 = vunpack.c.l.b16 %v187
  %v920 = vunpack.c.h.b16 %v187
  %v921 = vunpack.c.l.b16 %v188
  %v922 = vunpack.c.h.b16 %v188
  %v923 = vunpack.c.l.b16 %v189
  %v924 = vunpack.c.h.b16 %v189
  %v925 = vunpack.c.l.b16 %v190
  %v926 = vunpack.c.h.b16 %v190
  %v927 = vunpack.c.l.b16 %v191
  %v928 = vunpack.c.h.b16 %v191
  %v929 = vunpack.c.l.b16 %v192
  %v930 = vunpack.c.h.b16 %v192
  %v931 = vunpack.c.l.b16 %v193
  %v932 = vunpack.c.h.b16 %v193
  %v933 = vunpack.c.l.b16 %v194
  %v934 = vunpack.c.h.b16 %v194
  %v935 = vunpack.c.l.b16 %v195
  %v936 = vunpack.c.h.b16 %v195
  %v937 = vunpack.c.l.b16 %v196
  %v938 = vunpack.c.h.b16 %v196
  %v939 = vunpack.c.l.b16 %v197
  %v940 = vunpack.c.h.b16 %v197
  %v941 = vunpack.c.l.b16 %v198
  %v942 = vunpack.c.h.b16 %v198
  %v943 = vunpack.c.l.b16 %v199
  %v944 = vunpack.c.h.b16 %v199
  %v945 = vunpack.c.l.b16 %v200
  %v946 = vunpack.c.h.b16 %v200
  %v947 = vunpack.c.l.b16 %v201
  %v948 = vunpack.c.h.b16 %v201
  %v949 = vunpack.c.l.b16 %v202
  %v950 = vunpack.c.h.b16 %v202
  %v951 = vunpack.c.l.b16 %v203
  %v952 = vunpack.c.h.b16 %v203
  %v953 = vunpack.c.l.b16 %v204
  %v954 = vunpack.c.h.b16 %v204
  %v955 = vunpack.c.l.b16 %v205
  %v956 = vunpack.c.h.b16 %v205
  %v957 = vunpack.c.l.b16 %v206
  %v958 = vunpack.c.h.b16 %v206
  %v959 = vunpack.c.l.b16 %v207
  %v960 = vunpack.c.h.b16 %v207
  %v961 = vunpack.c.l.b16 %v208
  %v962 = vunpack.c.h.b16 %v208
  %v963 = vunpack.c.l.b16 %v209
  %v964 = vunpack.c.h.b16 %v209
  %v965 = vunpack.c.l.b16 %v210
  %v966 = vunpack.c.h.b16 %v210
  %v967 = vunpack.c.l.b16 %v211
  %v968 = vunpack.c.h.b16 %v211
  %v969 = vunpack.c.l.b16 %v212
  %v970 = vunpack.c.h.b16 %v212
  %v971 = vunpack.c.l.b16 %v213
  %v972 = vunpack.c.h.b16 %v213
  %v973 = vunpack.c.l.b16 %v214
  %v974 = vunpack.c.h.b16 %v214
  %v975 = vunpack.c.l.b16 %v215
  %v976 = vunpack.c.h.b16 %v215
  %v977 = vunpack.c.l.b16 %v216
  %v978 = vunpack.c.h.b16 %v216
  %v979 = vunpack.c.l.b16 %v217
  %v980 = vunpack.c.h.b16 %v217
  %v981 = vunpack.c.l.b16 %v218
  %v982 = vunpack.c.h.b16 %v218
  %v983 = vunpack.c.l.b16 %v219
  %v984 = vunpack.c.h.b16 %v219
  %v985 = vunpack.c.l.b16 %v220
  %v986 = vunpack.c.h.b16 %v220
  %v987 = vunpack.c.l.b16 %v221
  %v988 = vunpack.c.h.b16 %v221
  %v989 = vunpack.c.l.b16 %v222
  %v990 = vunpack.c.h.b16 %v222
  %v991 = vunpack.c.l.b16 %v223
  %v992 = vunpack.c.h.b16 %v223
  %v993 = vunpack.c.l.b16 %v224
  %v994 = vunpack.c.h.b16 %v224
  %v995 = vunpack.c.l.b16 %v225
  %v996 = vunpack.c.h.b16 %v225
  %v997 = vunpack.c.l.b16 %v226
  %v998 = vunpack.c.h.b16 %v226
  %v999 = vunpack.c.l.b16 %v227
  %v1000 = vunpack.c.h.b16 %v227
  %v1001 = vunpack.c.l.b16 %v228
  %v1002 = vunpack.c.h.b16 %v228
  %v1003 = vunpack.c.l.b16 %v229
  %v1004 = vunpack.c.h.b16 %v229
  %v1005 = vunpack.c.l.b16 %v230
  %v1006 = vunpack.c.h.b16 %v230
  %v1007 = vunpack.c.l.b16 %v231
  %v1008 = vunpack.c.h.b16 %v231
  %v1009 = vunpack.c.l.b16 %v232
  %v1010 = vunpack.c.h.b16 %v232
  %v1011 = vunpack.c.l.b16 %v233
  %v1012 = vunpack.c.h.b16 %v233
  %v1013 = vunpack.c.l.b16 %v234
  %v1014 = vunpack.c.h.b16 %v234
  %v1015 = vunpack.c.l.b16 %v235
  %v1016 = vunpack.c.h.b16 %v235
  %v1017 = vunpack.c.l.b16 %v236
  %v1018 = vunpack.c.h.b16 %v236
  %v1019 = vunpack.c.l.b16 %v237
  %v1020 = vunpack.c.h.b16 %v237
  %v1021 = vunpack.c.l.b16 %v238
  %v1022 = vunpack.c.h.b16 %v238
  %v1023 = vunpack.c.l.b16 %v239
  %v1024 = vunpack.c.h.b16 %v239
  %v1025 = vunpack.c.l.b16 %v240
  %v1026 = vunpack.c.h.b16 %v240
  %v1027 = vunpack.c.l.b16 %v241
  %v1028 = vunpack.c.h.b16 %v241
  %v1029 = vunpack.c.l.b16 %v242
  %v1030 = vunpack.c.h.b16 %v242
  %v1031 = vunpack.c.l.b16 %v243
  %v1032 = vunpack.c.h.b16 %v243
  %v1033 = vunpack.c.l.b16 %v244
  %v1034 = vunpack.c.h.b16 %v244
  %v1035 = vunpack.c.l.b16 %v245
  %v1036 = vunpack.c.h.b16 %v245
  %v1037 = vunpack.c.l.b16 %v246
  %v1038 = vunpack.c.h.b16 %v246
  %v1039 = vunpack.c.l.b16 %v247
  %v1040 = vunpack.c.h.b16 %v247
  %v1041 = vunpack.c.l.b16 %v248
  %v1042 = vunpack.c.h.b16 %v248
  %v1043 = vunpack.c.l.b16 %v249
  %v1044 = vunpack.c.h.b16 %v249
  %v1045 = vunpack.c.l.b16 %v250
  %v1046 = vunpack.c.h.b16 %v250
  %v1047 = vunpack.c.l.b16 %v251
  %v1048 = vunpack.c.h.b16 %v251
  %v1049 = vunpack.c.l.b16 %v252
  %v1050 = vunpack.c.h.b16 %v252
  %v1051 = vunpack.c.l.b16 %v253
  %v1052 = vunpack.c.h.b16 %v253
  %v1053 = vunpack.c.l.b16 %v254
  %v1054 = vunpack.c.h.b16 %v254
  %v1055 = vunpack.c.l.b16 %v255
  %v1056 = vunpack.c.h.b16 %v255
  %v1057 = vunpack.c.l.b16 %v256
  %v1058 = vunpack.c.h.b16 %v256
  %v1059 = vunpack.c.l.b16 %v257
  %v1060 = vunpack.c.h.b16 %v257
  %v1061 = vunpack.c.l.b16 %v258
  %v1062 = vunpack.c.h.b16 %v258
  %v1063 = vunpack.c.l.b16 %v259
  %v1064 = vunpack.c.h.b16 %v259
  %v1065 = vunpack.c.l.b16 %v260
  %v1066 = vunpack.c.h.b16 %v260
  %v1067 = vunpack.c.l.b16 %v261
  %v1068 = vunpack.c.h.b16 %v261
  %v1069 = vunpack.c.l.b16 %v262
  %v1070 = vunpack.c.h.b16 %v262
  %v1071 = vunpack.c.l.b16 %v263
  %v1072 = vunpack.c.h.b16 %v263
  %v1073 = vunpack.c.l.b16 %v264
  %v1074 = vunpack.c.h.b16 %v264
  %v1075 = vunpack.c.l.b16 %v265
  %v1076 = vunpack.c.h.b16 %v265
  %v1077 = vunpack.c.l.b16 %v266
  %v1078 = vunpack.c.h.b16 %v266
  %v1079 = vunpack.c.l.b16 %v267
  %v1080 = vunpack.c.h.b16 %v267
  %v1081 = vunpack.c.l.b16 %v268
  %v1082 = vunpack.c.h.b16 %v268
  %v1083 = vunpack.c.l.b16 %v269
  %v1084 = vunpack.c.h.b16 %v269
  %v1085 = vunpack.c.l.b16 %v270
  %v1086 = vunpack.c.h.b16 %v270
  %v1087 = vunpack.c.l.b16 %v271
  %v1088 = vunpack.c.h.b16 %v271
  %v1089 = vunpack.c.l.b16 %v272
  %v1090 = vunpack.c.h.b16 %v272
  %v1091 = vunpack.c.l.b16 %v273
  %v1092 = vunpack.c.h.b16 %v273
  %v1093 = vunpack.c.l.b16 %v274
  %v1094 = vunpack.c.h.b16 %v274
  %v1095 = vunpack.c.l.b16 %v275
  %v1096 = vunpack.c.h.b16 %v275
  %v1097 = vunpack.c.l.b16 %v276
  %v1098 = vunpack.c.h.b16 %v276
  %v1099 = vunpack.c.l.b16 %v277
  %v1100 = vunpack.c.h.b16 %v277
  %v1101 = vunpack.c.l.b16 %v278
  %v1102 = vunpack.c.h.b16 %v278
  %v1103 = vunpack.c.l.b16 %v279
  %v1104 = vunpack.c.h.b16 %v279
  %v1105 = vunpack.c.l.b16 %v280
  %v1106 = vunpack.c.h.b16 %v280
  %v1107 = vunpack.c.l.b16 %v281
  %v1108 = vunpack.c.h.b16 %v281
  %v1109 = vunpack.c.l.b16 %v282
  %v1110 = vunpack.c.h.b16 %v282
  %v1111 = vunpack.c.l.b16 %v283
  %v1112 = vunpack.c.h.b16 %v283
  %v1113 = vunpack.c.l.b16 %v284
  %v1114 = vunpack.c.h.b16 %v284
  %v1115 = vunpack.c.l.b16 %v285
  %v1116 = vunpack.c.h.b16 %v285
  %v1117 = vunpack.c.l.b16 %v286
  %v1118 = vunpack.c.h.b16 %v286
  %v1119 = vunpack.c.l.b16 %v287
  %v1120 = vunpack.c.h.b16 %v287
  %v1121 = vunpack.c.l.b16 %v288
  %v1122 = vunpack.c.h.b16 %v288
  %v1123 = vunpack.c.l.b16 %v289
  %v1124 = vunpack.c.h.b16 %v289
  %v1125 = vunpack.c.l.b16 %v290
  %v1126 = vunpack.c.h.b16 %v290
  %v1127 = vunpack.c.l.b16 %v291
  %v1128 = vunpack.c.h.b16 %v291
  %v1129 = vunpack.c.l.b16 %v292
  %v1130 = vunpack.c.h.b16 %v292
  %v1131 = vunpack.c.l.b16 %v293
  %v1132 = vunpack.c.h.b16 %v293
  %v1133 = vunpack.c.l.b16 %v294
  %v1134 = vunpack.c.h.b16 %v294
  %v1135 = vunpack.c.l.b16 %v295
  %v1136 = vunpack.c.h.b16 %v295
  %v1137 = vunpack.c.l.b16 %v296
  %v1138 = vunpack.c.h.b16 %v296
  %v1139 = vpack.c.b16 %v631, %v627
  %v1140 = vpack.c.b16 %v632, %v628
  %v1141 = vpack.c.b16 %v633, %v629
  %v1142 = vpack.c.b16 %v634, %v630
  %v1143 = vpack.c.b16 %v639, %v635
  %v1144 = vpack.c.b16 %v640, %v636
  %v1145 = vpack.c.b16 %v641, %v637
  %v1146 = vpack.c.b16 %v642, %v638
  %v1147 = vpack.c.b16 %v647, %v643
  %v1148 = vpack.c.b16 %v648, %v644
  %v1149 = vpack.c.b16 %v649, %v645
  %v1150 = vpack.c.b16 %v650, %v646
  %v1151 = vpack.c.b16 %v655, %v651
  %v1152 = vpack.c.b16 %v656, %v652
  %v1153 = vpack.c.b16 %v657, %v653
  %v1154 = vpack.c.b16 %v658, %v654
  %v1155 = vpack.c.b16 %v663, %v659
  %v1156 = vpack.c.b16 %v664, %v660
  %v1157 = vpack.c.b16 %v665, %v661
  %v1158 = vpack.c.b16 %v666, %v662
  %v1159 = vpack.c.b16 %v671, %v667
  %v1160 = vpack.c.b16 %v672, %v668
  %v1161 = vpack.c.b16 %v673, %v669
  %v1162 = vpack.c.b16 %v674, %v670
  %v1163 = vpack.c.b16 %v679, %v675
  %v1164 = vpack.c.b16 %v680, %v676
  %v1165 = vpack.c.b16 %v681, %v677
  %v1166 = vpack.c.b16 %v682, %v678
  %v1167 = vpack.c.b16 %v687, %v683
  %v1168 = vpack.c.b16 %v688, %v684
  %v1169 = vpack.c.b16 %v689, %v685
  %v1170 = vpack.c.b16 %v690, %v686
  %v1171 = vpack.c.b16 %v695, %v691
  %v1172 = vpack.c.b16 %v696, %v692
  %v1173 = vpack.c.b16 %v697, %v693
  %v1174 = vpack.c.b16 %v698, %v694
  %v1175 = vpack.c.b16 %v703, %v699
  %v1176 = vpack.c.b16 %v704, %v700
  %v1177 = vpack.c.b16 %v705, %v701
  %v1178 = vpack.c.b16 %v706, %v702
  %v1179 = vpack.c.b16 %v711, %v707
  %v1180 = vpack.c.b16 %v712, %v708
  %v1181 = vpack.c.b16 %v713, %v709
  %v1182 = vpack.c.b16 %v714, %v710
  %v1183 = vpack.c.b16 %v719, %v715
  %v1184 = vpack.c.b16 %v720, %v716
  %v1185 = vpack.c.b16 %v721, %v717
  %v1186 = vpack.c.b16 %v722, %v718
  %v1187 = vpack.c.b16 %v727, %v723
  %v1188 = vpack.c.b16 %v728, %v724
  %v1189 = vpack.c.b16 %v729, %v725
  %v1190 = vpack.c.b16 %v730, %v726
  %v1191 = vpack.c.b16 %v735, %v731
  %v1192 = vpack.c.b16 %v736, %v732
  %v1193 = vpack.c.b16 %v737, %v733
  %v1194 = vpack.c.b16 %v738, %v734
  %v1195 = vpack.c.b16 %v743, %v739
  %v1196 = vpack.c.b16 %v744, %v740
  %v1197 = vpack.c.b16 %v745, %v741
  %v1198 = vpack.c.b16 %v746, %v742
  %v1199 = vpack.c.b16 %v751, %v747
  %v1200 = vpack.c.b16 %v752, %v748
  %v1201 = vpack.c.b16 %v753, %v749
  %v1202 = vpack.c.b16 %v754, %v750
  %v1203 = vpack.c.b16 %v759, %v755
  %v1204 = vpack.c.b16 %v760, %v756
  %v1205 = vpack.c.b16 %v761, %v757
  %v1206 = vpack.c.b16 %v762, %v758
  %v1207 = vpack.c.b16 %v767, %v763
  %v1208 = vpack.c.b16 %v768, %v764
  %v1209 = vpack.c.b16 %v769, %v765
  %v1210 = vpack.c.b16 %v770, %v766
  %v1211 = vpack.c.b16 %v775, %v771
  %v1212 = vpack.c.b16 %v776, %v772
  %v1213 = vpack.c.b16 %v777, %v773
  %v1214 = vpack.c.b16 %v778, %v774
  %v1215 = vpack.c.b16 %v783, %v779
  %v1216 = vpack.c.b16 %v784, %v780
  %v1217 = vpack.c.b16 %v785, %v781
  %v1218 = vpack.c.b16 %v786, %v782
  %v1219 = vpack.c.b16 %v791, %v787
  %v1220 = vpack.c.b16 %v792, %v788
  %v1221 = vpack.c.b16 %v793, %v789
  %v1222 = vpack.c.b16 %v794, %v790
  %v1223 = vpack.c.b16 %v799, %v795
  %v1224 = vpack.c.b16 %v800, %v796
  %v1225 = vpack.c.b16 %v801, %v797
  %v1226 = vpack.c.b16 %v802, %v798
  %v1227 = vpack.c.b16 %v807, %v803
  %v1228 = vpack.c.b16 %v808, %v804
  %v1229 = vpack.c.b16 %v809, %v805
  %v1230 = vpack.c.b16 %v810, %v806
  %v1231 = vpack.c.b16 %v815, %v811
  %v1232 = vpack.c.b16 %v816, %v812
  %v1233 = vpack.c.b16 %v817, %v813
  %v1234 = vpack.c.b16 %v818, %v814
  %v1235 = vpack.c.b16 %v823, %v819
  %v1236 = vpack.c.b16 %v824, %v820
  %v1237 = vpack.c.b16 %v825, %v821
  %v1238 = vpack.c.b16 %v826, %v822
  %v1239 = vpack.c.b16 %v831, %v827
  %v1240 = vpack.c.b16 %v832, %v828
  %v1241 = vpack.c.b16 %v833, %v829
  %v1242 = vpack.c.b16 %v834, %v830
  %v1243 = vpack.c.b16 %v839, %v835
  %v1244 = vpack.c.b16 %v840, %v836
  %v1245 = vpack.c.b16 %v841, %v837
  %v1246 = vpack.c.b16 %v842, %v838
  %v1247 = vpack.c.b16 %v847, %v843
  %v1248 = vpack.c.b16 %v848, %v844
  %v1249 = vpack.c.b16 %v849, %v845
  %v1250 = vpack.c.b16 %v850, %v846
  %v1251 = vpack.c.b16 %v855, %v851
  %v1252 = vpack.c.b16 %v856, %v852
  %v1253 = vpack.c.b16 %v857, %v853
  %v1254 = vpack.c.b16 %v858, %v854
  %v1255 = vpack.c.b16 %v863, %v859
  %v1256 = vpack.c.b16 %v864, %v860
  %v1257 = vpack.c.b16 %v865, %v861
  %v1258 = vpack.c.b16 %v866, %v862
  %v1259 = vpack.c.b16 %v871, %v867
  %v1260 = vpack.c.b16 %v872, %v868
  %v1261 = vpack.c.b16 %v873, %v869
  %v1262 = vpack.c.b16 %v874, %v870
  %v1263 = vpack.c.b16 %v879, %v875
  %v1264 = vpack.c.b16 %v880, %v876
  %v1265 = vpack.c.b16 %v881, %v877
  %v1266 = vpack.c.b16 %v882, %v878
  %v1267 = vpack.c.b16 %v887, %v883
  %v1268 = vpack.c.b16 %v888, %v884
  %v1269 = vpack.c.b16 %v889, %v885
  %v1270 = vpack.c.b16 %v890, %v886
  %v1271 = vpack.c.b16 %v895, %v891
  %v1272 = vpack.c.b16 %v896, %v892
  %v1273 = vpack.c.b16 %v897, %v893
  %v1274 = vpack.c.b16 %v898, %v894
  %v1275 = vpack.c.b16 %v903, %v899
  %v1276 = vpack.c.b16 %v904, %v900
  %v1277 = vpack.c.b16 %v905, %v901
  %v1278 = vpack.c.b16 %v906, %v902
  %v1279 = vpack.c.b16 %v911, %v907
  %v1280 = vpack.c.b16 %v912, %v908
  %v1281 = vpack.c.b16 %v913, %v909
  %v1282 = vpack.c.b16 %v914, %v910
  %v1283 = vpack.c.b16 %v919, %v915
  %v1284 = vpack.c.b16 %v920, %v916
  %v1285 = vpack.c.b16 %v921, %v917
  %v1286 = vpack.c.b16 %v922, %v918
  %v1287 = vpack.c.b16 %v927, %v923
  %v1288 = vpack.c.b16 %v928, %v924
  %v1289 = vpack.c.b16 %v929, %v925
  %v1290 = vpack.c.b16 %v930, %v926
  %v1291 = vpack.c.b16 %v935, %v931
  %v1292 = vpack.c.b16 %v936, %v932
  %v1293 = vpack.c.b16 %v937, %v933
  %v1294 = vpack.c.b16 %v938, %v934
  %v1295 = vpack.c.b16 %v943, %v939
  %v1296 = vpack.c.b16 %v944, %v940
  %v1297 = vpack.c.b16 %v945, %v941
  %v1298 = vpack.c.b16 %v946, %v942
  %v1299 = vpack.c.b16 %v951, %v947
  %v1300 = vpack.c.b16 %v952, %v948
  %v1301 = vpack.c.b16 %v953, %v949
  %v1302 = vpack.c.b16 %v954, %v950
  %v1303 = vpack.c.b16 %v959, %v955
  %v1304 = vpack.c.b16 %v960, %v956
  %v1305 = vpack.c.b16 %v961, %v957
  %v1306 = vpack.c.b16 %v962, %v958
  %v1307 = vpack.c.b16 %v967, %v963
  %v1308 = vpack.c.b16 %v968, %v964
  %v1309 = vpack.c.b16 %v969, %v965
  %v1310 = vpack.c.b16 %v970, %v966
  %v1311 = vpack.c.b16 %v975, %v971
  %v1312 = vpack.c.b16 %v976, %v972
  %v1313 = vpack.c.b16 %v977, %v973
  %v1314 = vpack.c.b16 %v978, %v974
  %v1315 = vpack.c.b16 %v983, %v979
  %v1316 = vpack.c.b16 %v984, %v980
  %v1317 = vpack.c.b16 %v985, %v981
  %v1318 = vpack.c.b16 %v986, %v982
  %v1319 = vpack.c.b16 %v991, %v987
  %v1320 = vpack.c.b16 %v992, %v988
  %v1321 = vpack.c.b16 %v993, %v989
  %v1322 = vpack.c.b16 %v994, %v990
  %v1323 = vpack.c.b16 %v999, %v995
  %v1324 = vpack.c.b16 %v1000, %v996
  %v1325 = vpack.c.b16 %v1001, %v997
  %v1326 = vpack.c.b16 %v1002, %v998
  %v1327 = vpack.c.b16 %v1007, %v1003
  %v1328 = vpack.c.b16 %v1008, %v1004
  %v1329 = vpack.c.b16 %v1009, %v1005
  %v1330 = vpack.c.b16 %v1010, %v1006
  %v1331 = vpack.c.b16 %v1015, %v1011
  %v1332 = vpack.c.b16 %v1016, %v1012
  %v1333 = vpack.c.b16 %v1017, %v1013
  %v1334 = vpack.c.b16 %v1018, %v1014
  %v1335 = vpack.c.b16 %v1023, %v1019
  %v1336 = vpack.c.b16 %v1024, %v1020
  %v1337 = vpack.c.b16 %v1025, %v1021
  %v1338 = vpack.c.b16 %v1026, %v1022
  %v1339 = vpack.c.b16 %v1031, %v1027
  %v1340 = vpack.c.b16 %v1032, %v1028
  %v1341 = vpack.c.b16 %v1033, %v1029
  %v1342 = vpack.c.b16 %v1034, %v1030
  %v1343 = vpack.c.b16 %v1039, %v1035
  %v1344 = vpack.c.b16 %v1040, %v1036
  %v1345 = vpack.c.b16 %v1041, %v1037
  %v1346 = vpack.c.b16 %v1042, %v1038
  %v1347 = vpack.c.b16 %v1047, %v1043
  %v1348 = vpack.c.b16 %v1048, %v1044
  %v1349 = vpack.c.b16 %v1049, %v1045
  %v1350 = vpack.c.b16 %v1050, %v1046
  %v1351 = vpack.c.b16 %v1055, %v1051
  %v1352 = vpack.c.b16 %v1056, %v1052
  %v1353 = vpack.c.b16 %v1057, %v1053
  %v1354 = vpack.c.b16 %v1058, %v1054
  %v1355 = vpack.c.b16 %v1063, %v1059
  %v1356 = vpack.c.b16 %v1064, %v1060
  %v1357 = vpack.c.b16 %v1065, %v1061
  %v1358 = vpack.c.b16 %v1066, %v1062
  %v1359 = vpack.c.b16 %v1071, %v1067
  %v1360 = vpack.c.b16 %v1072, %v1068
  %v1361 = vpack.c.b16 %v1073, %v1069
  %v1362 = vpack.c.b16 %v1074, %v1070
  %v1363 = vpack.c.b16 %v1079, %v1075
  %v1364 = vpack.c.b16 %v1080, %v1076
  %v1365 = vpack.c.b16 %v1081, %v1077
  %v1366 = vpack.c.b16 %v1082, %v1078
  %v1367 = vpack.c.b16 %v1087, %v1083
  %v1368 = vpack.c.b16 %v1088, %v1084
  %v1369 = vpack.c.b16 %v1089, %v1085
  %v1370 = vpack.c.b16 %v1090, %v1086
  %v1371 = vpack.c.b16 %v1095, %v1091
  %v1372 = vpack.c.b16 %v1096, %v1092
  %v1373 = vpack.c.b16 %v1097, %v1093
  %v1374 = vpack.c.b16 %v1098, %v1094
  %v1375 = vpack.c.b16 %v1103, %v1099
  %v1376 = vpack.c.b16 %v1104, %v1100
  %v1377 = vpack.c.b16 %v1105, %v1101
  %v1378 = vpack.c.b16 %v1106, %v1102
  %v1379 = vpack.c.b16 %v1111, %v1107
  %v1380 = vpack.c.b16 %v1112, %v1108
  %v1381 = vpack.c.b16 %v1113, %v1109
  %v1382 = vpack.c.b16 %v1114, %v1110
  %v1383 = vpack.c.b16 %v1119, %v1115
  %v1384 = vpack.c.b16 %v1120, %v1116
  %v1385 = vpack.c.b16 %v1121, %v1117
  %v1386 = vpack.c.b16 %v1122, %v1118
  %v1387 = vpack.c.b16 %v1127, %v1123
  %v1388 = vpack.c.b16 %v1128, %v1124
  %v1389 = vpack.c.b16 %v1129, %v1125
  %v1390 = vpack.c.b16 %v1130, %v1126
  %v1391 = vpack.c.b16 %v1135, %v1131
  %v1392 = vpack.c.b16 %v1136, %v1132
  %v1393 = vpack.c.b16 %v1137, %v1133
  %v1394 = vpack.c.b16 %v1138, %v1134
  %1651 = vmatprep.subr.bf16.mxu0 %v1140
  %1652 = vmatpush1.bf16.msra.mxu0 %v1139
  %1653 = vmatprep.subr.bf16.mxu0 %v1144
  %1654 = vmatpush1.bf16.msra.mxu0 %v1143
  %1655 = vmatprep.subr.bf16.mxu0 %v1148
  %1656 = vmatpush1.bf16.msra.mxu0 %v1147
  %1657 = vmatprep.subr.bf16.mxu0 %v1152
  %1658 = vmatpush1.bf16.msra.mxu0 %v1151
  %1659 = vmatprep.subr.bf16.mxu0 %v1156
  %1660 = vmatpush1.bf16.msra.mxu0 %v1155
  %1661 = vmatprep.subr.bf16.mxu0 %v1160
  %1662 = vmatpush1.bf16.msra.mxu0 %v1159
  %1663 = vmatprep.subr.bf16.mxu0 %v1164
  %1664 = vmatpush1.bf16.msra.mxu0 %v1163
  %1665 = vmatprep.subr.bf16.mxu0 %v1168
  %1666 = vmatpush1.bf16.msra.mxu0 %v1167
  %1667 = vmatprep.subr.bf16.mxu0 %v1172
  %1668 = vmatpush1.bf16.msra.mxu0 %v1171
  %1669 = vmatprep.subr.bf16.mxu0 %v1176
  %1670 = vmatpush1.bf16.msra.mxu0 %v1175
  %1671 = vmatprep.subr.bf16.mxu0 %v1180
  %1672 = vmatpush1.bf16.msra.mxu0 %v1179
  %1673 = vmatprep.subr.bf16.mxu0 %v1184
  %1674 = vmatpush1.bf16.msra.mxu0 %v1183
  %1675 = vmatprep.subr.bf16.mxu0 %v1188
  %1676 = vmatpush1.bf16.msra.mxu0 %v1187
  %1677 = vmatprep.subr.bf16.mxu0 %v1192
  %1678 = vmatpush1.bf16.msra.mxu0 %v1191
  %1679 = vmatprep.subr.bf16.mxu0 %v1196
  %1680 = vmatpush1.bf16.msra.mxu0 %v1195
  %1681 = vmatprep.subr.bf16.mxu0 %v1200
  %1682 = vmatpush1.bf16.msra.mxu0 %v1199
  %1683 = vmatprep.mubr.bf16.mxu0 %v342
  %1684 = vmatmul.mubr.bf16.gmra.mrb[0].mxu0 %v341
  %v1685 = vpop.f32.mrb[0].mxu0
  %v1686 = vadd.f32 %v354, %v1685
  %v1687 = vpop.f32.mrb[0].mxu0
  %v1688 = vadd.f32 %v358, %v1687
  %v1689 = vpop.f32.mrb[0].mxu0
  %v1690 = vpop.f32.mrb[0].mxu0
  %1691 = vdwg.mxu0
  %1692 = vmatprep.subr.bf16.mxu0 %v1204
  %1693 = vmatpush1.bf16.msra.mxu0 %v1203
  %1694 = vmatprep.subr.bf16.mxu0 %v1208
  %1695 = vmatpush1.bf16.msra.mxu0 %v1207
  %1696 = vmatprep.subr.bf16.mxu0 %v1212
  %1697 = vmatpush1.bf16.msra.mxu0 %v1211
  %1698 = vmatprep.subr.bf16.mxu0 %v1216
  %1699 = vmatpush1.bf16.msra.mxu0 %v1215
  %1700 = vmatprep.subr.bf16.mxu0 %v1220
  %1701 = vmatpush1.bf16.msra.mxu0 %v1219
  %1702 = vmatprep.subr.bf16.mxu0 %v1224
  %1703 = vmatpush1.bf16.msra.mxu0 %v1223
  %1704 = vmatprep.subr.bf16.mxu0 %v1228
  %1705 = vmatpush1.bf16.msra.mxu0 %v1227
  %1706 = vmatprep.subr.bf16.mxu0 %v1232
  %1707 = vmatpush1.bf16.msra.mxu0 %v1231
  %1708 = vmatprep.subr.bf16.mxu0 %v1236
  %1709 = vmatpush1.bf16.msra.mxu0 %v1235
  %1710 = vmatprep.subr.bf16.mxu0 %v1240
  %1711 = vmatpush1.bf16.msra.mxu0 %v1239
  %1712 = vmatprep.subr.bf16.mxu0 %v1244
  %1713 = vmatpush1.bf16.msra.mxu0 %v1243
  %1714 = vmatprep.subr.bf16.mxu0 %v1248
  %1715 = vmatpush1.bf16.msra.mxu0 %v1247
  %1716 = vmatprep.subr.bf16.mxu0 %v1252
  %1717 = vmatpush1.bf16.msra.mxu0 %v1251
  %1718 = vmatprep.subr.bf16.mxu0 %v1256
  %1719 = vmatpush1.bf16.msra.mxu0 %v1255
  %1720 = vmatprep.subr.bf16.mxu0 %v1260
  %1721 = vmatpush1.bf16.msra.mxu0 %v1259
  %1722 = vmatprep.subr.bf16.mxu0 %v1264
  %1723 = vmatpush1.bf16.msra.mxu0 %v1263
  %1724 = vmatprep.mubr.bf16.mxu0 %v344
  %1725 = vmatmul.mubr.bf16.gmra.mrb[0].mxu0 %v343
  %v1726 = vpop.f32.mrb[0].mxu0
  %v1727 = vadd.f32 %v1686, %v1726
  %v1728 = vpop.f32.mrb[0].mxu0
  %v1729 = vadd.f32 %v1688, %v1728
  %v1730 = vpop.f32.mrb[0].mxu0
  %v1731 = vpop.f32.mrb[0].mxu0
  %1732 = vdwg.mxu0
  %1733 = vmatprep.subr.bf16.mxu0 %v1268
  %1734 = vmatpush1.bf16.msra.mxu0 %v1267
  %1735 = vmatprep.subr.bf16.mxu0 %v1272
  %1736 = vmatpush1.bf16.msra.mxu0 %v1271
  %1737 = vmatprep.subr.bf16.mxu0 %v1276
  %1738 = vmatpush1.bf16.msra.mxu0 %v1275
  %1739 = vmatprep.subr.bf16.mxu0 %v1280
  %1740 = vmatpush1.bf16.msra.mxu0 %v1279
  %1741 = vmatprep.subr.bf16.mxu0 %v1284
  %1742 = vmatpush1.bf16.msra.mxu0 %v1283
  %1743 = vmatprep.subr.bf16.mxu0 %v1288
  %1744 = vmatpush1.bf16.msra.mxu0 %v1287
  %1745 = vmatprep.subr.bf16.mxu0 %v1292
  %1746 = vmatpush1.bf16.msra.mxu0 %v1291
  %1747 = vmatprep.subr.bf16.mxu0 %v1296
  %1748 = vmatpush1.bf16.msra.mxu0 %v1295
  %1749 = vmatprep.subr.bf16.mxu0 %v1300
  %1750 = vmatpush1.bf16.msra.mxu0 %v1299
  %1751 = vmatprep.subr.bf16.mxu0 %v1304
  %1752 = vmatpush1.bf16.msra.mxu0 %v1303
  %1753 = vmatprep.subr.bf16.mxu0 %v1308
  %1754 = vmatpush1.bf16.msra.mxu0 %v1307
  %1755 = vmatprep.subr.bf16.mxu0 %v1312
  %1756 = vmatpush1.bf16.msra.mxu0 %v1311
  %1757 = vmatprep.subr.bf16.mxu0 %v1316
  %1758 = vmatpush1.bf16.msra.mxu0 %v1315
  %1759 = vmatprep.subr.bf16.mxu0 %v1320
  %1760 = vmatpush1.bf16.msra.mxu0 %v1319
  %1761 = vmatprep.subr.bf16.mxu0 %v1324
  %1762 = vmatpush1.bf16.msra.mxu0 %v1323
  %1763 = vmatprep.subr.bf16.mxu0 %v1328
  %1764 = vmatpush1.bf16.msra.mxu0 %v1327
  %1765 = vmatprep.mubr.bf16.mxu0 %v346
  %1766 = vmatmul.mubr.bf16.gmra.mrb[0].mxu0 %v345
  %v1767 = vpop.f32.mrb[0].mxu0
  %v1768 = vadd.f32 %v1727, %v1767
  %v1769 = vpop.f32.mrb[0].mxu0
  %v1770 = vadd.f32 %v1729, %v1769
  %v1771 = vpop.f32.mrb[0].mxu0
  %v1772 = vpop.f32.mrb[0].mxu0
  %1773 = vdwg.mxu0
  %1774 = vmatprep.subr.bf16.mxu0 %v1332
  %1775 = vmatpush1.bf16.msra.mxu0 %v1331
  %1776 = vmatprep.subr.bf16.mxu0 %v1336
  %1777 = vmatpush1.bf16.msra.mxu0 %v1335
  %1778 = vmatprep.subr.bf16.mxu0 %v1340
  %1779 = vmatpush1.bf16.msra.mxu0 %v1339
  %1780 = vmatprep.subr.bf16.mxu0 %v1344
  %1781 = vmatpush1.bf16.msra.mxu0 %v1343
  %1782 = vmatprep.subr.bf16.mxu0 %v1348
  %1783 = vmatpush1.bf16.msra.mxu0 %v1347
  %1784 = vmatprep.subr.bf16.mxu0 %v1352
  %1785 = vmatpush1.bf16.msra.mxu0 %v1351
  %1786 = vmatprep.subr.bf16.mxu0 %v1356
  %1787 = vmatpush1.bf16.msra.mxu0 %v1355
  %1788 = vmatprep.subr.bf16.mxu0 %v1360
  %1789 = vmatpush1.bf16.msra.mxu0 %v1359
  %1790 = vmatprep.subr.bf16.mxu0 %v1364
  %1791 = vmatpush1.bf16.msra.mxu0 %v1363
  %1792 = vmatprep.subr.bf16.mxu0 %v1368
  %1793 = vmatpush1.bf16.msra.mxu0 %v1367
  %1794 = vmatprep.subr.bf16.mxu0 %v1372
  %1795 = vmatpush1.bf16.msra.mxu0 %v1371
  %1796 = vmatprep.subr.bf16.mxu0 %v1376
  %1797 = vmatpush1.bf16.msra.mxu0 %v1375
  %1798 = vmatprep.subr.bf16.mxu0 %v1380
  %1799 = vmatpush1.bf16.msra.mxu0 %v1379
  %1800 = vmatprep.subr.bf16.mxu0 %v1384
  %1801 = vmatpush1.bf16.msra.mxu0 %v1383
  %1802 = vmatprep.subr.bf16.mxu0 %v1388
  %1803 = vmatpush1.bf16.msra.mxu0 %v1387
  %1804 = vmatprep.subr.bf16.mxu0 %v1392
  %1805 = vmatpush1.bf16.msra.mxu0 %v1391
  %1806 = vmatprep.mubr.bf16.mxu0 %v348
  %1807 = vmatmul.mubr.bf16.gmra.mrb[0].mxu0 %v347
  %v1808 = vpop.f32.mrb[0].mxu0
  %v1809 = vadd.f32 %v1768, %v1808
  %v1810 = vpop.f32.mrb[0].mxu0
  %v1811 = vadd.f32 %v1770, %v1810
  %v1812 = vpop.f32.mrb[0].mxu0
  %v1813 = vpop.f32.mrb[0].mxu0
  %1814 = vdwg.mxu0
  %1815 = vmatprep.subr.bf16.mxu0 %v1142
  %1816 = vmatpush1.bf16.msra.mxu0 %v1141
  %1817 = vmatprep.subr.bf16.mxu0 %v1146
  %1818 = vmatpush1.bf16.msra.mxu0 %v1145
  %1819 = vmatprep.subr.bf16.mxu0 %v1150
  %1820 = vmatpush1.bf16.msra.mxu0 %v1149
  %1821 = vmatprep.subr.bf16.mxu0 %v1154
  %1822 = vmatpush1.bf16.msra.mxu0 %v1153
  %1823 = vmatprep.subr.bf16.mxu0 %v1158
  %1824 = vmatpush1.bf16.msra.mxu0 %v1157
  %1825 = vmatprep.subr.bf16.mxu0 %v1162
  %1826 = vmatpush1.bf16.msra.mxu0 %v1161
  %1827 = vmatprep.subr.bf16.mxu0 %v1166
  %1828 = vmatpush1.bf16.msra.mxu0 %v1165
  %1829 = vmatprep.subr.bf16.mxu0 %v1170
  %1830 = vmatpush1.bf16.msra.mxu0 %v1169
  %1831 = vmatprep.subr.bf16.mxu0 %v1174
  %1832 = vmatpush1.bf16.msra.mxu0 %v1173
  %1833 = vmatprep.subr.bf16.mxu0 %v1178
  %1834 = vmatpush1.bf16.msra.mxu0 %v1177
  %1835 = vmatprep.subr.bf16.mxu0 %v1182
  %1836 = vmatpush1.bf16.msra.mxu0 %v1181
  %1837 = vmatprep.subr.bf16.mxu0 %v1186
  %1838 = vmatpush1.bf16.msra.mxu0 %v1185
  %1839 = vmatprep.subr.bf16.mxu0 %v1190
  %1840 = vmatpush1.bf16.msra.mxu0 %v1189
  %1841 = vmatprep.subr.bf16.mxu0 %v1194
  %1842 = vmatpush1.bf16.msra.mxu0 %v1193
  %1843 = vmatprep.subr.bf16.mxu0 %v1198
  %1844 = vmatpush1.bf16.msra.mxu0 %v1197
  %1845 = vmatprep.subr.bf16.mxu0 %v1202
  %1846 = vmatpush1.bf16.msra.mxu0 %v1201
  %1847 = vmatprep.mubr.bf16.mxu0 %v342
  %1848 = vmatmul.mubr.bf16.gmra.mrb[0].mxu0 %v341
  %v1849 = vpop.f32.mrb[0].mxu0
  %v1850 = vadd.f32 %v362, %v1849
  %v1851 = vpop.f32.mrb[0].mxu0
  %v1852 = vadd.f32 %v366, %v1851
  %v1853 = vpop.f32.mrb[0].mxu0
  %v1854 = vpop.f32.mrb[0].mxu0
  %1855 = vdwg.mxu0
  %1856 = vmatprep.subr.bf16.mxu0 %v1206
  %1857 = vmatpush1.bf16.msra.mxu0 %v1205
  %1858 = vmatprep.subr.bf16.mxu0 %v1210
  %1859 = vmatpush1.bf16.msra.mxu0 %v1209
  %1860 = vmatprep.subr.bf16.mxu0 %v1214
  %1861 = vmatpush1.bf16.msra.mxu0 %v1213
  %1862 = vmatprep.subr.bf16.mxu0 %v1218
  %1863 = vmatpush1.bf16.msra.mxu0 %v1217
  %1864 = vmatprep.subr.bf16.mxu0 %v1222
  %1865 = vmatpush1.bf16.msra.mxu0 %v1221
  %1866 = vmatprep.subr.bf16.mxu0 %v1226
  %1867 = vmatpush1.bf16.msra.mxu0 %v1225
  %1868 = vmatprep.subr.bf16.mxu0 %v1230
  %1869 = vmatpush1.bf16.msra.mxu0 %v1229
  %1870 = vmatprep.subr.bf16.mxu0 %v1234
  %1871 = vmatpush1.bf16.msra.mxu0 %v1233
  %1872 = vmatprep.subr.bf16.mxu0 %v1238
  %1873 = vmatpush1.bf16.msra.mxu0 %v1237
  %1874 = vmatprep.subr.bf16.mxu0 %v1242
  %1875 = vmatpush1.bf16.msra.mxu0 %v1241
  %1876 = vmatprep.subr.bf16.mxu0 %v1246
  %1877 = vmatpush1.bf16.msra.mxu0 %v1245
  %1878 = vmatprep.subr.bf16.mxu0 %v1250
  %1879 = vmatpush1.bf16.msra.mxu0 %v1249
  %1880 = vmatprep.subr.bf16.mxu0 %v1254
  %1881 = vmatpush1.bf16.msra.mxu0 %v1253
  %1882 = vmatprep.subr.bf16.mxu0 %v1258
  %1883 = vmatpush1.bf16.msra.mxu0 %v1257
  %1884 = vmatprep.subr.bf16.mxu0 %v1262
  %1885 = vmatpush1.bf16.msra.mxu0 %v1261
  %1886 = vmatprep.subr.bf16.mxu0 %v1266
  %1887 = vmatpush1.bf16.msra.mxu0 %v1265
  %1888 = vmatprep.mubr.bf16.mxu0 %v344
  %1889 = vmatmul.mubr.bf16.gmra.mrb[0].mxu0 %v343
  %v1890 = vpop.f32.mrb[0].mxu0
  %v1891 = vadd.f32 %v1850, %v1890
  %v1892 = vpop.f32.mrb[0].mxu0
  %v1893 = vadd.f32 %v1852, %v1892
  %v1894 = vpop.f32.mrb[0].mxu0
  %v1895 = vpop.f32.mrb[0].mxu0
  %1896 = vdwg.mxu0
  %1897 = vmatprep.subr.bf16.mxu0 %v1270
  %1898 = vmatpush1.bf16.msra.mxu0 %v1269
  %1899 = vmatprep.subr.bf16.mxu0 %v1274
  %1900 = vmatpush1.bf16.msra.mxu0 %v1273
  %1901 = vmatprep.subr.bf16.mxu0 %v1278
  %1902 = vmatpush1.bf16.msra.mxu0 %v1277
  %1903 = vmatprep.subr.bf16.mxu0 %v1282
  %1904 = vmatpush1.bf16.msra.mxu0 %v1281
  %1905 = vmatprep.subr.bf16.mxu0 %v1286
  %1906 = vmatpush1.bf16.msra.mxu0 %v1285
  %1907 = vmatprep.subr.bf16.mxu0 %v1290
  %1908 = vmatpush1.bf16.msra.mxu0 %v1289
  %1909 = vmatprep.subr.bf16.mxu0 %v1294
  %1910 = vmatpush1.bf16.msra.mxu0 %v1293
  %1911 = vmatprep.subr.bf16.mxu0 %v1298
  %1912 = vmatpush1.bf16.msra.mxu0 %v1297
  %1913 = vmatprep.subr.bf16.mxu0 %v1302
  %1914 = vmatpush1.bf16.msra.mxu0 %v1301
  %1915 = vmatprep.subr.bf16.mxu0 %v1306
  %1916 = vmatpush1.bf16.msra.mxu0 %v1305
  %1917 = vmatprep.subr.bf16.mxu0 %v1310
  %1918 = vmatpush1.bf16.msra.mxu0 %v1309
  %1919 = vmatprep.subr.bf16.mxu0 %v1314
  %1920 = vmatpush1.bf16.msra.mxu0 %v1313
  %1921 = vmatprep.subr.bf16.mxu0 %v1318
  %1922 = vmatpush1.bf16.msra.mxu0 %v1317
  %1923 = vmatprep.subr.bf16.mxu0 %v1322
  %1924 = vmatpush1.bf16.msra.mxu0 %v1321
  %1925 = vmatprep.subr.bf16.mxu0 %v1326
  %1926 = vmatpush1.bf16.msra.mxu0 %v1325
  %1927 = vmatprep.subr.bf16.mxu0 %v1330
  %1928 = vmatpush1.bf16.msra.mxu0 %v1329
  %1929 = vmatprep.mubr.bf16.mxu0 %v346
  %1930 = vmatmul.mubr.bf16.gmra.mrb[0].mxu0 %v345
  %v1931 = vpop.f32.mrb[0].mxu0
  %v1932 = vadd.f32 %v1891, %v1931
  %v1933 = vpop.f32.mrb[0].mxu0
  %v1934 = vadd.f32 %v1893, %v1933
  %v1935 = vpop.f32.mrb[0].mxu0
  %v1936 = vpop.f32.mrb[0].mxu0
  %1937 = vdwg.mxu0
  %1938 = vmatprep.subr.bf16.mxu0 %v1334
  %1939 = vmatpush1.bf16.msra.mxu0 %v1333
  %1940 = vmatprep.subr.bf16.mxu0 %v1338
  %1941 = vmatpush1.bf16.msra.mxu0 %v1337
  %1942 = vmatprep.subr.bf16.mxu0 %v1342
  %1943 = vmatpush1.bf16.msra.mxu0 %v1341
  %1944 = vmatprep.subr.bf16.mxu0 %v1346
  %1945 = vmatpush1.bf16.msra.mxu0 %v1345
  %1946 = vmatprep.subr.bf16.mxu0 %v1350
  %1947 = vmatpush1.bf16.msra.mxu0 %v1349
  %1948 = vmatprep.subr.bf16.mxu0 %v1354
  %1949 = vmatpush1.bf16.msra.mxu0 %v1353
  %1950 = vmatprep.subr.bf16.mxu0 %v1358
  %1951 = vmatpush1.bf16.msra.mxu0 %v1357
  %1952 = vmatprep.subr.bf16.mxu0 %v1362
  %1953 = vmatpush1.bf16.msra.mxu0 %v1361
  %1954 = vmatprep.subr.bf16.mxu0 %v1366
  %1955 = vmatpush1.bf16.msra.mxu0 %v1365
  %1956 = vmatprep.subr.bf16.mxu0 %v1370
  %1957 = vmatpush1.bf16.msra.mxu0 %v1369
  %1958 = vmatprep.subr.bf16.mxu0 %v1374
  %1959 = vmatpush1.bf16.msra.mxu0 %v1373
  %1960 = vmatprep.subr.bf16.mxu0 %v1378
  %1961 = vmatpush1.bf16.msra.mxu0 %v1377
  %1962 = vmatprep.subr.bf16.mxu0 %v1382
  %1963 = vmatpush1.bf16.msra.mxu0 %v1381
  %1964 = vmatprep.subr.bf16.mxu0 %v1386
  %1965 = vmatpush1.bf16.msra.mxu0 %v1385
  %1966 = vmatprep.subr.bf16.mxu0 %v1390
  %1967 = vmatpush1.bf16.msra.mxu0 %v1389
  %1968 = vmatprep.subr.bf16.mxu0 %v1394
  %1969 = vmatpush1.bf16.msra.mxu0 %v1393
  %1970 = vmatprep.mubr.bf16.mxu0 %v348
  %1971 = vmatmul.mubr.bf16.gmra.mrb[0].mxu0 %v347
  %v1972 = vpop.f32.mrb[0].mxu0
  %v1973 = vadd.f32 %v1932, %v1972
  %v1974 = vpop.f32.mrb[0].mxu0
  %v1975 = vadd.f32 %v1934, %v1974
  %v1976 = vpop.f32.mrb[0].mxu0
  %v1977 = vpop.f32.mrb[0].mxu0
  %1978 = vdwg.mxu0
  %vm1979 = vcmp.ge.f32.partialorder %v1809, 0.0
  %vm1980 = vcmp.ge.f32.partialorder %v1811, 0.0
  %vm1981 = vcmp.ge.f32.partialorder %v1973, 0.0
  %vm1982 = vcmp.ge.f32.partialorder %v1975, 0.0
  %v1983 = vmul.f32 %v1809, 0.01
  %v1984 = vmul.f32 %v1811, 0.01
  %v1985 = vmul.f32 %v1973, 0.01
  %v1986 = vmul.f32 %v1975, 0.01
  %v1987 = vsel %vm1979, %v1809, %v1983
  %v1988 = vsel %vm1980, %v1811, %v1984
  %v1989 = vsel %vm1981, %v1973, %v1985
  %v1990 = vsel %vm1982, %v1975, %v1986
  %v1991 = vld [vmem:[%s2] sm:$0xff]
  %v1992 = vld [vmem:[%s2 + $0x8] sm:$0xff]
  %v1993 = vld [vmem:[%s2 + $0x10] sm:$0xff]
  %v1994 = vld [vmem:[%s2 + $0x18] sm:$0xff]
  %v1995 = vld [vmem:[%s2 + $0x20] sm:$0xff]
  %v1996 = vld [vmem:[%s2 + $0x28] sm:$0xff]
  %v1997 = vld [vmem:[%s2 + $0x30] sm:$0xff]
  %v1998 = vld [vmem:[%s2 + $0x38] sm:$0xff]
  %v1999 = vld [vmem:[%s2 + $0x40] sm:$0xff]
  %v2000 = vld [vmem:[%s2 + $0x48] sm:$0xff]
  %v2001 = vld [vmem:[%s2 + $0x50] sm:$0xff]
  %v2002 = vld [vmem:[%s2 + $0x58] sm:$0xff]
  %v2003 = vld [vmem:[%s2 + $0x60] sm:$0xff]
  %v2004 = vld [vmem:[%s2 + $0x68] sm:$0xff]
  %v2005 = vld [vmem:[%s2 + $0x70] sm:$0xff]
  %v2006 = vld [vmem:[%s2 + $0x78] sm:$0xff]
  %v2007 = vld [vmem:[%s2 + $0x80] sm:$0xff]
  %v2008 = vld [vmem:[%s2 + $0x88] sm:$0xff]
  %v2009 = vld [vmem:[%s2 + $0x90] sm:$0xff]
  %v2010 = vld [vmem:[%s2 + $0x98] sm:$0xff]
  %v2011 = vld [vmem:[%s2 + $0xa0] sm:$0xff]
  %v2012 = vld [vmem:[%s2 + $0xa8] sm:$0xff]
  %v2013 = vld [vmem:[%s2 + $0xb0] sm:$0xff]
  %v2014 = vld [vmem:[%s2 + $0xb8] sm:$0xff]
  %v2015 = vld [vmem:[%s2 + $0xc0] sm:$0xff]
  %v2016 = vld [vmem:[%s2 + $0xc8] sm:$0xff]
  %v2017 = vld [vmem:[%s2 + $0xd0] sm:$0xff]
  %v2018 = vld [vmem:[%s2 + $0xd8] sm:$0xff]
  %v2019 = vld [vmem:[%s2 + $0xe0] sm:$0xff]
  %v2020 = vld [vmem:[%s2 + $0xe8] sm:$0xff]
  %v2021 = vld [vmem:[%s2 + $0xf0] sm:$0xff]
  %v2022 = vld [vmem:[%s2 + $0xf8] sm:$0xff]
  %v2023 = vld [vmem:[%s2 + $0x100] sm:$0xff]
  %v2024 = vld [vmem:[%s2 + $0x108] sm:$0xff]
  %v2025 = vld [vmem:[%s2 + $0x110] sm:$0xff]
  %v2026 = vld [vmem:[%s2 + $0x118] sm:$0xff]
  %v2027 = vld [vmem:[%s2 + $0x120] sm:$0xff]
  %v2028 = vld [vmem:[%s2 + $0x128] sm:$0xff]
  %v2029 = vld [vmem:[%s2 + $0x130] sm:$0xff]
  %v2030 = vld [vmem:[%s2 + $0x138] sm:$0xff]
  %v2031 = vld [vmem:[%s2 + $0x140] sm:$0xff]
  %v2032 = vld [vmem:[%s2 + $0x148] sm:$0xff]
  %v2033 = vld [vmem:[%s2 + $0x150] sm:$0xff]
  %v2034 = vld [vmem:[%s2 + $0x158] sm:$0xff]
  %v2035 = vld [vmem:[%s2 + $0x160] sm:$0xff]
  %v2036 = vld [vmem:[%s2 + $0x168] sm:$0xff]
  %v2037 = vld [vmem:[%s2 + $0x170] sm:$0xff]
  %v2038 = vld [vmem:[%s2 + $0x178] sm:$0xff]
  %v2039 = vld [vmem:[%s2 + $0x180] sm:$0xff]
  %v2040 = vld [vmem:[%s2 + $0x188] sm:$0xff]
  %v2041 = vld [vmem:[%s2 + $0x190] sm:$0xff]
  %v2042 = vld [vmem:[%s2 + $0x198] sm:$0xff]
  %v2043 = vld [vmem:[%s2 + $0x1a0] sm:$0xff]
  %v2044 = vld [vmem:[%s2 + $0x1a8] sm:$0xff]
  %v2045 = vld [vmem:[%s2 + $0x1b0] sm:$0xff]
  %v2046 = vld [vmem:[%s2 + $0x1b8] sm:$0xff]
  %v2047 = vld [vmem:[%s2 + $0x1c0] sm:$0xff]
  %v2048 = vld [vmem:[%s2 + $0x1c8] sm:$0xff]
  %v2049 = vld [vmem:[%s2 + $0x1d0] sm:$0xff]
  %v2050 = vld [vmem:[%s2 + $0x1d8] sm:$0xff]
  %v2051 = vld [vmem:[%s2 + $0x1e0] sm:$0xff]
  %v2052 = vld [vmem:[%s2 + $0x1e8] sm:$0xff]
  %v2053 = vld [vmem:[%s2 + $0x1f0] sm:$0xff]
  %v2054 = vld [vmem:[%s2 + $0x1f8] sm:$0xff]
  %v2055 = vld [vmem:[%s2 + $0x200] sm:$0xff]
  %v2056 = vld [vmem:[%s2 + $0x208] sm:$0xff]
  %v2057 = vld [vmem:[%s2 + $0x210] sm:$0xff]
  %v2058 = vld [vmem:[%s2 + $0x218] sm:$0xff]
  %v2059 = vld [vmem:[%s2 + $0x220] sm:$0xff]
  %v2060 = vld [vmem:[%s2 + $0x228] sm:$0xff]
  %v2061 = vld [vmem:[%s2 + $0x230] sm:$0xff]
  %v2062 = vld [vmem:[%s2 + $0x238] sm:$0xff]
  %v2063 = vld [vmem:[%s2 + $0x240] sm:$0xff]
  %v2064 = vld [vmem:[%s2 + $0x248] sm:$0xff]
  %v2065 = vld [vmem:[%s2 + $0x250] sm:$0xff]
  %v2066 = vld [vmem:[%s2 + $0x258] sm:$0xff]
  %v2067 = vld [vmem:[%s2 + $0x260] sm:$0xff]
  %v2068 = vld [vmem:[%s2 + $0x268] sm:$0xff]
  %v2069 = vld [vmem:[%s2 + $0x270] sm:$0xff]
  %v2070 = vld [vmem:[%s2 + $0x278] sm:$0xff]
  %v2071 = vld [vmem:[%s2 + $0x280] sm:$0xff]
  %v2072 = vld [vmem:[%s2 + $0x288] sm:$0xff]
  %v2073 = vld [vmem:[%s2 + $0x290] sm:$0xff]
  %v2074 = vld [vmem:[%s2 + $0x298] sm:$0xff]
  %v2075 = vld [vmem:[%s2 + $0x2a0] sm:$0xff]
  %v2076 = vld [vmem:[%s2 + $0x2a8] sm:$0xff]
  %v2077 = vld [vmem:[%s2 + $0x2b0] sm:$0xff]
  %v2078 = vld [vmem:[%s2 + $0x2b8] sm:$0xff]
  %v2079 = vld [vmem:[%s2 + $0x2c0] sm:$0xff]
  %v2080 = vld [vmem:[%s2 + $0x2c8] sm:$0xff]
  %v2081 = vld [vmem:[%s2 + $0x2d0] sm:$0xff]
  %v2082 = vld [vmem:[%s2 + $0x2d8] sm:$0xff]
  %v2083 = vld [vmem:[%s2 + $0x2e0] sm:$0xff]
  %v2084 = vld [vmem:[%s2 + $0x2e8] sm:$0xff]
  %v2085 = vld [vmem:[%s2 + $0x2f0] sm:$0xff]
  %v2086 = vld [vmem:[%s2 + $0x2f8] sm:$0xff]
  %v2087 = vld [vmem:[%s2 + $0x300] sm:$0xff]
  %v2088 = vld [vmem:[%s2 + $0x308] sm:$0xff]
  %v2089 = vpack.c.bf16 %v1987, %v1987
  %v2090 = vpack.c.bf16 %v1988, %v1988
  %v2091 = vpack.c.bf16 %v1989, %v1989
  %v2092 = vpack.c.bf16 %v1990, %v1990
  %v2093 = vld [vmem:[%s7] sm:$0xf]
  %v2095 = vlaneseq
  %v2096 = vshrl.u32 %v2095, 7
  %v2097 = vsub.s32 0, %v2096
  %v2098 = vrot.slane %v2093, %v2097
  %v2099 = vlaneseq
  %v2100 = vshrl.u32 %v2099, 7
  %v2101 = vsub.s32 1, %v2100
  %v2102 = vrot.slane %v2093, %v2101
  %v2103 = vlaneseq
  %v2104 = vshrl.u32 %v2103, 7
  %v2105 = vsub.s32 2, %v2104
  %v2106 = vrot.slane %v2093, %v2105
  %v2107 = vlaneseq
  %v2108 = vshrl.u32 %v2107, 7
  %v2109 = vsub.s32 3, %v2108
  %v2110 = vrot.slane %v2093, %v2109
  %v2213 = vunpack.c.l.b16 %v1991
  %v2214 = vunpack.c.h.b16 %v1991
  %v2215 = vunpack.c.l.b16 %v1992
  %v2216 = vunpack.c.h.b16 %v1992
  %v2217 = vunpack.c.l.b16 %v1993
  %v2218 = vunpack.c.h.b16 %v1993
  %v2219 = vunpack.c.l.b16 %v1994
  %v2220 = vunpack.c.h.b16 %v1994
  %v2221 = vunpack.c.l.b16 %v1995
  %v2222 = vunpack.c.h.b16 %v1995
  %v2223 = vunpack.c.l.b16 %v1996
  %v2224 = vunpack.c.h.b16 %v1996
  %v2225 = vunpack.c.l.b16 %v1997
  %v2226 = vunpack.c.h.b16 %v1997
  %v2227 = vunpack.c.l.b16 %v1998
  %v2228 = vunpack.c.h.b16 %v1998
  %v2229 = vunpack.c.l.b16 %v1999
  %v2230 = vunpack.c.h.b16 %v1999
  %v2231 = vunpack.c.l.b16 %v2000
  %v2232 = vunpack.c.h.b16 %v2000
  %v2233 = vunpack.c.l.b16 %v2001
  %v2234 = vunpack.c.h.b16 %v2001
  %v2235 = vunpack.c.l.b16 %v2002
  %v2236 = vunpack.c.h.b16 %v2002
  %v2237 = vunpack.c.l.b16 %v2003
  %v2238 = vunpack.c.h.b16 %v2003
  %v2239 = vunpack.c.l.b16 %v2004
  %v2240 = vunpack.c.h.b16 %v2004
  %v2241 = vunpack.c.l.b16 %v2005
  %v2242 = vunpack.c.h.b16 %v2005
  %v2243 = vunpack.c.l.b16 %v2006
  %v2244 = vunpack.c.h.b16 %v2006
  %v2245 = vunpack.c.l.b16 %v2007
  %v2246 = vunpack.c.h.b16 %v2007
  %v2247 = vunpack.c.l.b16 %v2008
  %v2248 = vunpack.c.h.b16 %v2008
  %v2249 = vunpack.c.l.b16 %v2009
  %v2250 = vunpack.c.h.b16 %v2009
  %v2251 = vunpack.c.l.b16 %v2010
  %v2252 = vunpack.c.h.b16 %v2010
  %v2253 = vunpack.c.l.b16 %v2011
  %v2254 = vunpack.c.h.b16 %v2011
  %v2255 = vunpack.c.l.b16 %v2012
  %v2256 = vunpack.c.h.b16 %v2012
  %v2257 = vunpack.c.l.b16 %v2013
  %v2258 = vunpack.c.h.b16 %v2013
  %v2259 = vunpack.c.l.b16 %v2014
  %v2260 = vunpack.c.h.b16 %v2014
  %v2261 = vunpack.c.l.b16 %v2015
  %v2262 = vunpack.c.h.b16 %v2015
  %v2263 = vunpack.c.l.b16 %v2016
  %v2264 = vunpack.c.h.b16 %v2016
  %v2265 = vunpack.c.l.b16 %v2017
  %v2266 = vunpack.c.h.b16 %v2017
  %v2267 = vunpack.c.l.b16 %v2018
  %v2268 = vunpack.c.h.b16 %v2018
  %v2269 = vunpack.c.l.b16 %v2019
  %v2270 = vunpack.c.h.b16 %v2019
  %v2271 = vunpack.c.l.b16 %v2020
  %v2272 = vunpack.c.h.b16 %v2020
  %v2273 = vunpack.c.l.b16 %v2021
  %v2274 = vunpack.c.h.b16 %v2021
  %v2275 = vunpack.c.l.b16 %v2022
  %v2276 = vunpack.c.h.b16 %v2022
  %v2277 = vunpack.c.l.b16 %v2023
  %v2278 = vunpack.c.h.b16 %v2023
  %v2279 = vunpack.c.l.b16 %v2024
  %v2280 = vunpack.c.h.b16 %v2024
  %v2281 = vunpack.c.l.b16 %v2025
  %v2282 = vunpack.c.h.b16 %v2025
  %v2283 = vunpack.c.l.b16 %v2026
  %v2284 = vunpack.c.h.b16 %v2026
  %v2285 = vunpack.c.l.b16 %v2027
  %v2286 = vunpack.c.h.b16 %v2027
  %v2287 = vunpack.c.l.b16 %v2028
  %v2288 = vunpack.c.h.b16 %v2028
  %v2289 = vunpack.c.l.b16 %v2029
  %v2290 = vunpack.c.h.b16 %v2029
  %v2291 = vunpack.c.l.b16 %v2030
  %v2292 = vunpack.c.h.b16 %v2030
  %v2293 = vunpack.c.l.b16 %v2031
  %v2294 = vunpack.c.h.b16 %v2031
  %v2295 = vunpack.c.l.b16 %v2032
  %v2296 = vunpack.c.h.b16 %v2032
  %v2297 = vunpack.c.l.b16 %v2033
  %v2298 = vunpack.c.h.b16 %v2033
  %v2299 = vunpack.c.l.b16 %v2034
  %v2300 = vunpack.c.h.b16 %v2034
  %v2301 = vunpack.c.l.b16 %v2035
  %v2302 = vunpack.c.h.b16 %v2035
  %v2303 = vunpack.c.l.b16 %v2036
  %v2304 = vunpack.c.h.b16 %v2036
  %v2305 = vunpack.c.l.b16 %v2037
  %v2306 = vunpack.c.h.b16 %v2037
  %v2307 = vunpack.c.l.b16 %v2038
  %v2308 = vunpack.c.h.b16 %v2038
  %v2309 = vunpack.c.l.b16 %v2039
  %v2310 = vunpack.c.h.b16 %v2039
  %v2311 = vunpack.c.l.b16 %v2040
  %v2312 = vunpack.c.h.b16 %v2040
  %v2313 = vunpack.c.l.b16 %v2041
  %v2314 = vunpack.c.h.b16 %v2041
  %v2315 = vunpack.c.l.b16 %v2042
  %v2316 = vunpack.c.h.b16 %v2042
  %v2317 = vunpack.c.l.b16 %v2043
  %v2318 = vunpack.c.h.b16 %v2043
  %v2319 = vunpack.c.l.b16 %v2044
  %v2320 = vunpack.c.h.b16 %v2044
  %v2321 = vunpack.c.l.b16 %v2045
  %v2322 = vunpack.c.h.b16 %v2045
  %v2323 = vunpack.c.l.b16 %v2046
  %v2324 = vunpack.c.h.b16 %v2046
  %v2325 = vunpack.c.l.b16 %v2047
  %v2326 = vunpack.c.h.b16 %v2047
  %v2327 = vunpack.c.l.b16 %v2048
  %v2328 = vunpack.c.h.b16 %v2048
  %v2329 = vunpack.c.l.b16 %v2049
  %v2330 = vunpack.c.h.b16 %v2049
  %v2331 = vunpack.c.l.b16 %v2050
  %v2332 = vunpack.c.h.b16 %v2050
  %v2333 = vunpack.c.l.b16 %v2051
  %v2334 = vunpack.c.h.b16 %v2051
  %v2335 = vunpack.c.l.b16 %v2052
  %v2336 = vunpack.c.h.b16 %v2052
  %v2337 = vunpack.c.l.b16 %v2053
  %v2338 = vunpack.c.h.b16 %v2053
  %v2339 = vunpack.c.l.b16 %v2054
  %v2340 = vunpack.c.h.b16 %v2054
  %v2341 = vunpack.c.l.b16 %v2055
  %v2342 = vunpack.c.h.b16 %v2055
  %v2343 = vunpack.c.l.b16 %v2056
  %v2344 = vunpack.c.h.b16 %v2056
  %v2345 = vunpack.c.l.b16 %v2057
  %v2346 = vunpack.c.h.b16 %v2057
  %v2347 = vunpack.c.l.b16 %v2058
  %v2348 = vunpack.c.h.b16 %v2058
  %v2349 = vunpack.c.l.b16 %v2059
  %v2350 = vunpack.c.h.b16 %v2059
  %v2351 = vunpack.c.l.b16 %v2060
  %v2352 = vunpack.c.h.b16 %v2060
  %v2353 = vunpack.c.l.b16 %v2061
  %v2354 = vunpack.c.h.b16 %v2061
  %v2355 = vunpack.c.l.b16 %v2062
  %v2356 = vunpack.c.h.b16 %v2062
  %v2357 = vunpack.c.l.b16 %v2063
  %v2358 = vunpack.c.h.b16 %v2063
  %v2359 = vunpack.c.l.b16 %v2064
  %v2360 = vunpack.c.h.b16 %v2064
  %v2361 = vunpack.c.l.b16 %v2065
  %v2362 = vunpack.c.h.b16 %v2065
  %v2363 = vunpack.c.l.b16 %v2066
  %v2364 = vunpack.c.h.b16 %v2066
  %v2365 = vunpack.c.l.b16 %v2067
  %v2366 = vunpack.c.h.b16 %v2067
  %v2367 = vunpack.c.l.b16 %v2068
  %v2368 = vunpack.c.h.b16 %v2068
  %v2369 = vunpack.c.l.b16 %v2069
  %v2370 = vunpack.c.h.b16 %v2069
  %v2371 = vunpack.c.l.b16 %v2070
  %v2372 = vunpack.c.h.b16 %v2070
  %v2373 = vunpack.c.l.b16 %v2071
  %v2374 = vunpack.c.h.b16 %v2071
  %v2375 = vunpack.c.l.b16 %v2072
  %v2376 = vunpack.c.h.b16 %v2072
  %v2377 = vunpack.c.l.b16 %v2073
  %v2378 = vunpack.c.h.b16 %v2073
  %v2379 = vunpack.c.l.b16 %v2074
  %v2380 = vunpack.c.h.b16 %v2074
  %v2381 = vunpack.c.l.b16 %v2075
  %v2382 = vunpack.c.h.b16 %v2075
  %v2383 = vunpack.c.l.b16 %v2076
  %v2384 = vunpack.c.h.b16 %v2076
  %v2385 = vunpack.c.l.b16 %v2077
  %v2386 = vunpack.c.h.b16 %v2077
  %v2387 = vunpack.c.l.b16 %v2078
  %v2388 = vunpack.c.h.b16 %v2078
  %v2389 = vunpack.c.l.b16 %v2079
  %v2390 = vunpack.c.h.b16 %v2079
  %v2391 = vunpack.c.l.b16 %v2080
  %v2392 = vunpack.c.h.b16 %v2080
  %v2393 = vunpack.c.l.b16 %v2081
  %v2394 = vunpack.c.h.b16 %v2081
  %v2395 = vunpack.c.l.b16 %v2082
  %v2396 = vunpack.c.h.b16 %v2082
  %v2397 = vunpack.c.l.b16 %v2083
  %v2398 = vunpack.c.h.b16 %v2083
  %v2399 = vunpack.c.l.b16 %v2084
  %v2400 = vunpack.c.h.b16 %v2084
  %v2401 = vunpack.c.l.b16 %v2085
  %v2402 = vunpack.c.h.b16 %v2085
  %v2403 = vunpack.c.l.b16 %v2086
  %v2404 = vunpack.c.h.b16 %v2086
  %v2405 = vunpack.c.l.b16 %v2087
  %v2406 = vunpack.c.h.b16 %v2087
  %v2407 = vunpack.c.l.b16 %v2088
  %v2408 = vunpack.c.h.b16 %v2088
  %v2409 = vpack.c.b16 %v2217, %v2213
  %v2410 = vpack.c.b16 %v2218, %v2214
  %v2411 = vpack.c.b16 %v2219, %v2215
  %v2412 = vpack.c.b16 %v2220, %v2216
  %v2413 = vpack.c.b16 %v2225, %v2221
  %v2414 = vpack.c.b16 %v2226, %v2222
  %v2415 = vpack.c.b16 %v2227, %v2223
  %v2416 = vpack.c.b16 %v2228, %v2224
  %v2417 = vpack.c.b16 %v2233, %v2229
  %v2418 = vpack.c.b16 %v2234, %v2230
  %v2419 = vpack.c.b16 %v2235, %v2231
  %v2420 = vpack.c.b16 %v2236, %v2232
  %v2421 = vpack.c.b16 %v2241, %v2237
  %v2422 = vpack.c.b16 %v2242, %v2238
  %v2423 = vpack.c.b16 %v2243, %v2239
  %v2424 = vpack.c.b16 %v2244, %v2240
  %v2425 = vpack.c.b16 %v2249, %v2245
  %v2426 = vpack.c.b16 %v2250, %v2246
  %v2427 = vpack.c.b16 %v2251, %v2247
  %v2428 = vpack.c.b16 %v2252, %v2248
  %v2429 = vpack.c.b16 %v2257, %v2253
  %v2430 = vpack.c.b16 %v2258, %v2254
  %v2431 = vpack.c.b16 %v2259, %v2255
  %v2432 = vpack.c.b16 %v2260, %v2256
  %v2433 = vpack.c.b16 %v2265, %v2261
  %v2434 = vpack.c.b16 %v2266, %v2262
  %v2435 = vpack.c.b16 %v2267, %v2263
  %v2436 = vpack.c.b16 %v2268, %v2264
  %v2437 = vpack.c.b16 %v2273, %v2269
  %v2438 = vpack.c.b16 %v2274, %v2270
  %v2439 = vpack.c.b16 %v2275, %v2271
  %v2440 = vpack.c.b16 %v2276, %v2272
  %v2441 = vpack.c.b16 %v2281, %v2277
  %v2442 = vpack.c.b16 %v2282, %v2278
  %v2443 = vpack.c.b16 %v2283, %v2279
  %v2444 = vpack.c.b16 %v2284, %v2280
  %v2445 = vpack.c.b16 %v2289, %v2285
  %v2446 = vpack.c.b16 %v2290, %v2286
  %v2447 = vpack.c.b16 %v2291, %v2287
  %v2448 = vpack.c.b16 %v2292, %v2288
  %v2449 = vpack.c.b16 %v2297, %v2293
  %v2450 = vpack.c.b16 %v2298, %v2294
  %v2451 = vpack.c.b16 %v2299, %v2295
  %v2452 = vpack.c.b16 %v2300, %v2296
  %v2453 = vpack.c.b16 %v2305, %v2301
  %v2454 = vpack.c.b16 %v2306, %v2302
  %v2455 = vpack.c.b16 %v2307, %v2303
  %v2456 = vpack.c.b16 %v2308, %v2304
  %v2457 = vpack.c.b16 %v2313, %v2309
  %v2458 = vpack.c.b16 %v2314, %v2310
  %v2459 = vpack.c.b16 %v2315, %v2311
  %v2460 = vpack.c.b16 %v2316, %v2312
  %v2461 = vpack.c.b16 %v2321, %v2317
  %v2462 = vpack.c.b16 %v2322, %v2318
  %v2463 = vpack.c.b16 %v2323, %v2319
  %v2464 = vpack.c.b16 %v2324, %v2320
  %v2465 = vpack.c.b16 %v2329, %v2325
  %v2466 = vpack.c.b16 %v2330, %v2326
  %v2467 = vpack.c.b16 %v2331, %v2327
  %v2468 = vpack.c.b16 %v2332, %v2328
  %v2469 = vpack.c.b16 %v2337, %v2333
  %v2470 = vpack.c.b16 %v2338, %v2334
  %v2471 = vpack.c.b16 %v2339, %v2335
  %v2472 = vpack.c.b16 %v2340, %v2336
  %v2473 = vpack.c.b16 %v2345, %v2341
  %v2474 = vpack.c.b16 %v2346, %v2342
  %v2475 = vpack.c.b16 %v2347, %v2343
  %v2476 = vpack.c.b16 %v2348, %v2344
  %v2477 = vpack.c.b16 %v2353, %v2349
  %v2478 = vpack.c.b16 %v2354, %v2350
  %v2479 = vpack.c.b16 %v2355, %v2351
  %v2480 = vpack.c.b16 %v2356, %v2352
  %v2481 = vpack.c.b16 %v2361, %v2357
  %v2482 = vpack.c.b16 %v2362, %v2358
  %v2483 = vpack.c.b16 %v2363, %v2359
  %v2484 = vpack.c.b16 %v2364, %v2360
  %v2485 = vpack.c.b16 %v2369, %v2365
  %v2486 = vpack.c.b16 %v2370, %v2366
  %v2487 = vpack.c.b16 %v2371, %v2367
  %v2488 = vpack.c.b16 %v2372, %v2368
  %v2489 = vpack.c.b16 %v2377, %v2373
  %v2490 = vpack.c.b16 %v2378, %v2374
  %v2491 = vpack.c.b16 %v2379, %v2375
  %v2492 = vpack.c.b16 %v2380, %v2376
  %v2493 = vpack.c.b16 %v2385, %v2381
  %v2494 = vpack.c.b16 %v2386, %v2382
  %v2495 = vpack.c.b16 %v2387, %v2383
  %v2496 = vpack.c.b16 %v2388, %v2384
  %v2497 = vpack.c.b16 %v2393, %v2389
  %v2498 = vpack.c.b16 %v2394, %v2390
  %v2499 = vpack.c.b16 %v2395, %v2391
  %v2500 = vpack.c.b16 %v2396, %v2392
  %v2501 = vpack.c.b16 %v2401, %v2397
  %v2502 = vpack.c.b16 %v2402, %v2398
  %v2503 = vpack.c.b16 %v2403, %v2399
  %v2504 = vpack.c.b16 %v2404, %v2400
  %v2505 = vpack.c.b16 %v2405, %v2405
  %v2506 = vpack.c.b16 %v2406, %v2406
  %v2507 = vpack.c.b16 %v2407, %v2407
  %v2508 = vpack.c.b16 %v2408, %v2408
  %vm2605 = vcmask 64512
  %v2607 = vsel %vm2605, %v2092, 0
  %vm2609 = vcmask 1043456
  %v2611 = vsel %vm2609, %v2505, 0
  %v2614 = vsel %vm2609, %v2506, 0
  %v2617 = vsel %vm2609, %v2507, 0
  %v2620 = vsel %vm2609, %v2508, 0
  %2622 = vmatprep.subr.bf16.mxu0 %v2410
  %2623 = vmatpush1.bf16.msra.mxu0 %v2409
  %2624 = vmatprep.subr.bf16.mxu0 %v2414
  %2625 = vmatpush1.bf16.msra.mxu0 %v2413
  %2626 = vmatprep.subr.bf16.mxu0 %v2418
  %2627 = vmatpush1.bf16.msra.mxu0 %v2417
  %2628 = vmatprep.subr.bf16.mxu0 %v2422
  %2629 = vmatpush1.bf16.msra.mxu0 %v2421
  %2630 = vmatprep.subr.bf16.mxu0 %v2426
  %2631 = vmatpush1.bf16.msra.mxu0 %v2425
  %2632 = vmatprep.subr.bf16.mxu0 %v2430
  %2633 = vmatpush1.bf16.msra.mxu0 %v2429
  %2634 = vmatprep.subr.bf16.mxu0 %v2434
  %2635 = vmatpush1.bf16.msra.mxu0 %v2433
  %2636 = vmatprep.subr.bf16.mxu0 %v2438
  %2637 = vmatpush1.bf16.msra.mxu0 %v2437
  %2638 = vmatprep.subr.bf16.mxu0 %v2442
  %2639 = vmatpush1.bf16.msra.mxu0 %v2441
  %2640 = vmatprep.subr.bf16.mxu0 %v2446
  %2641 = vmatpush1.bf16.msra.mxu0 %v2445
  %2642 = vmatprep.subr.bf16.mxu0 %v2450
  %2643 = vmatpush1.bf16.msra.mxu0 %v2449
  %2644 = vmatprep.subr.bf16.mxu0 %v2454
  %2645 = vmatpush1.bf16.msra.mxu0 %v2453
  %2646 = vmatprep.subr.bf16.mxu0 %v2458
  %2647 = vmatpush1.bf16.msra.mxu0 %v2457
  %2648 = vmatprep.subr.bf16.mxu0 %v2462
  %2649 = vmatpush1.bf16.msra.mxu0 %v2461
  %2650 = vmatprep.subr.bf16.mxu0 %v2466
  %2651 = vmatpush1.bf16.msra.mxu0 %v2465
  %2652 = vmatprep.subr.bf16.mxu0 %v2470
  %2653 = vmatpush1.bf16.msra.mxu0 %v2469
  %2654 = vmatprep.mubr.bf16.mxu0 %v2090
  %2655 = vmatmul.mubr.bf16.gmra.mrb[0].mxu0 %v2089
  %v2656 = vpop.f32.mrb[0].mxu0
  %v2657 = vadd.f32 %v2098, %v2656
  %v2658 = vpop.f32.mrb[0].mxu0
  %v2659 = vadd.f32 %v2102, %v2658
  %v2660 = vpop.f32.mrb[0].mxu0
  %v2661 = vpop.f32.mrb[0].mxu0
  %2662 = vdwg.mxu0
  %2663 = vmatprep.subr.bf16.mxu0 %v2474
  %2664 = vmatpush1.bf16.msra.mxu0 %v2473
  %2665 = vmatprep.subr.bf16.mxu0 %v2478
  %2666 = vmatpush1.bf16.msra.mxu0 %v2477
  %2667 = vmatprep.subr.bf16.mxu0 %v2482
  %2668 = vmatpush1.bf16.msra.mxu0 %v2481
  %2669 = vmatprep.subr.bf16.mxu0 %v2486
  %2670 = vmatpush1.bf16.msra.mxu0 %v2485
  %2671 = vmatprep.subr.bf16.mxu0 %v2490
  %2672 = vmatpush1.bf16.msra.mxu0 %v2489
  %2673 = vmatprep.subr.bf16.mxu0 %v2494
  %2674 = vmatpush1.bf16.msra.mxu0 %v2493
  %2675 = vmatprep.subr.bf16.mxu0 %v2498
  %2676 = vmatpush1.bf16.msra.mxu0 %v2497
  %2677 = vmatprep.subr.bf16.mxu0 %v2502
  %2678 = vmatpush1.bf16.msra.mxu0 %v2501
  %2679 = vmatprep.subr.bf16.mxu0 %v2614
  %2680 = vmatpush1.bf16.msra.mxu0 %v2611
  %2681 = vmatprep.subr.bf16.mxu0 0
  %2682 = vmatpush1.bf16.msra.mxu0 0
  %2683 = vmatprep.subr.bf16.mxu0 0
  %2684 = vmatpush1.bf16.msra.mxu0 0
  %2685 = vmatprep.subr.bf16.mxu0 0
  %2686 = vmatpush1.bf16.msra.mxu0 0
  %2687 = vmatprep.subr.bf16.mxu0 0
  %2688 = vmatpush1.bf16.msra.mxu0 0
  %2689 = vmatprep.subr.bf16.mxu0 0
  %2690 = vmatpush1.bf16.msra.mxu0 0
  %2691 = vmatprep.subr.bf16.mxu0 0
  %2692 = vmatpush1.bf16.msra.mxu0 0
  %2693 = vmatprep.subr.bf16.mxu0 0
  %2694 = vmatpush1.bf16.msra.mxu0 0
  %2695 = vmatprep.mubr.bf16.mxu0 %v2607
  %2696 = vmatmul.mubr.bf16.gmra.mrb[0].mxu0 %v2091
  %v2697 = vpop.f32.mrb[0].mxu0
  %v2698 = vadd.f32 %v2657, %v2697
  %v2699 = vpop.f32.mrb[0].mxu0
  %v2700 = vadd.f32 %v2659, %v2699
  %v2701 = vpop.f32.mrb[0].mxu0
  %v2702 = vpop.f32.mrb[0].mxu0
  %2703 = vdwg.mxu0
  %2704 = vmatprep.subr.bf16.mxu0 %v2412
  %2705 = vmatpush1.bf16.msra.mxu0 %v2411
  %2706 = vmatprep.subr.bf16.mxu0 %v2416
  %2707 = vmatpush1.bf16.msra.mxu0 %v2415
  %2708 = vmatprep.subr.bf16.mxu0 %v2420
  %2709 = vmatpush1.bf16.msra.mxu0 %v2419
  %2710 = vmatprep.subr.bf16.mxu0 %v2424
  %2711 = vmatpush1.bf16.msra.mxu0 %v2423
  %2712 = vmatprep.subr.bf16.mxu0 %v2428
  %2713 = vmatpush1.bf16.msra.mxu0 %v2427
  %2714 = vmatprep.subr.bf16.mxu0 %v2432
  %2715 = vmatpush1.bf16.msra.mxu0 %v2431
  %2716 = vmatprep.subr.bf16.mxu0 %v2436
  %2717 = vmatpush1.bf16.msra.mxu0 %v2435
  %2718 = vmatprep.subr.bf16.mxu0 %v2440
  %2719 = vmatpush1.bf16.msra.mxu0 %v2439
  %2720 = vmatprep.subr.bf16.mxu0 %v2444
  %2721 = vmatpush1.bf16.msra.mxu0 %v2443
  %2722 = vmatprep.subr.bf16.mxu0 %v2448
  %2723 = vmatpush1.bf16.msra.mxu0 %v2447
  %2724 = vmatprep.subr.bf16.mxu0 %v2452
  %2725 = vmatpush1.bf16.msra.mxu0 %v2451
  %2726 = vmatprep.subr.bf16.mxu0 %v2456
  %2727 = vmatpush1.bf16.msra.mxu0 %v2455
  %2728 = vmatprep.subr.bf16.mxu0 %v2460
  %2729 = vmatpush1.bf16.msra.mxu0 %v2459
  %2730 = vmatprep.subr.bf16.mxu0 %v2464
  %2731 = vmatpush1.bf16.msra.mxu0 %v2463
  %2732 = vmatprep.subr.bf16.mxu0 %v2468
  %2733 = vmatpush1.bf16.msra.mxu0 %v2467
  %2734 = vmatprep.subr.bf16.mxu0 %v2472
  %2735 = vmatpush1.bf16.msra.mxu0 %v2471
  %2736 = vmatprep.mubr.bf16.mxu0 %v2090
  %2737 = vmatmul.mubr.bf16.gmra.mrb[0].mxu0 %v2089
  %v2738 = vpop.f32.mrb[0].mxu0
  %v2739 = vadd.f32 %v2106, %v2738
  %v2740 = vpop.f32.mrb[0].mxu0
  %v2741 = vadd.f32 %v2110, %v2740
  %v2742 = vpop.f32.mrb[0].mxu0
  %v2743 = vpop.f32.mrb[0].mxu0
  %2744 = vdwg.mxu0
  %2745 = vmatprep.subr.bf16.mxu0 %v2476
  %2746 = vmatpush1.bf16.msra.mxu0 %v2475
  %2747 = vmatprep.subr.bf16.mxu0 %v2480
  %2748 = vmatpush1.bf16.msra.mxu0 %v2479
  %2749 = vmatprep.subr.bf16.mxu0 %v2484
  %2750 = vmatpush1.bf16.msra.mxu0 %v2483
  %2751 = vmatprep.subr.bf16.mxu0 %v2488
  %2752 = vmatpush1.bf16.msra.mxu0 %v2487
  %2753 = vmatprep.subr.bf16.mxu0 %v2492
  %2754 = vmatpush1.bf16.msra.mxu0 %v2491
  %2755 = vmatprep.subr.bf16.mxu0 %v2496
  %2756 = vmatpush1.bf16.msra.mxu0 %v2495
  %2757 = vmatprep.subr.bf16.mxu0 %v2500
  %2758 = vmatpush1.bf16.msra.mxu0 %v2499
  %2759 = vmatprep.subr.bf16.mxu0 %v2504
  %2760 = vmatpush1.bf16.msra.mxu0 %v2503
  %2761 = vmatprep.subr.bf16.mxu0 %v2620
  %2762 = vmatpush1.bf16.msra.mxu0 %v2617
  %2763 = vmatprep.subr.bf16.mxu0 0
  %2764 = vmatpush1.bf16.msra.mxu0 0
  %2765 = vmatprep.subr.bf16.mxu0 0
  %2766 = vmatpush1.bf16.msra.mxu0 0
  %2767 = vmatprep.subr.bf16.mxu0 0
  %2768 = vmatpush1.bf16.msra.mxu0 0
  %2769 = vmatprep.subr.bf16.mxu0 0
  %2770 = vmatpush1.bf16.msra.mxu0 0
  %2771 = vmatprep.subr.bf16.mxu0 0
  %2772 = vmatpush1.bf16.msra.mxu0 0
  %2773 = vmatprep.subr.bf16.mxu0 0
  %2774 = vmatpush1.bf16.msra.mxu0 0
  %2775 = vmatprep.subr.bf16.mxu0 0
  %2776 = vmatpush1.bf16.msra.mxu0 0
  %2777 = vmatprep.mubr.bf16.mxu0 %v2607
  %2778 = vmatmul.mubr.bf16.gmra.mrb[0].mxu0 %v2091
  %v2779 = vpop.f32.mrb[0].mxu0
  %v2780 = vadd.f32 %v2739, %v2779
  %v2781 = vpop.f32.mrb[0].mxu0
  %v2782 = vadd.f32 %v2741, %v2781
  %v2783 = vpop.f32.mrb[0].mxu0
  %v2784 = vpop.f32.mrb[0].mxu0
  %2785 = vdwg.mxu0
  %vm2786 = vcmp.ge.f32.partialorder %v2698, 0.0
  %vm2787 = vcmp.ge.f32.partialorder %v2700, 0.0
  %vm2788 = vcmp.ge.f32.partialorder %v2780, 0.0
  %vm2789 = vcmp.ge.f32.partialorder %v2782, 0.0
  %v2790 = vmul.f32 %v2698, 0.01
  %v2791 = vmul.f32 %v2700, 0.01
  %v2792 = vmul.f32 %v2780, 0.01
  %v2793 = vmul.f32 %v2782, 0.01
  %v2794 = vsel %vm2786, %v2698, %v2790
  %v2795 = vsel %vm2787, %v2700, %v2791
  %v2796 = vsel %vm2788, %v2780, %v2792
  %v2797 = vsel %vm2789, %v2782, %v2793
  %v2798 = vld [vmem:[%s3] sm:$0xf]
  %v2799 = vld [vmem:[%s3 + $0x4] sm:$0xf]
  %v2800 = vld [vmem:[%s3 + $0x8] sm:$0xf]
  %v2801 = vld [vmem:[%s3 + $0xc] sm:$0xf]
  %v2802 = vld [vmem:[%s3 + $0x10] sm:$0xf]
  %v2803 = vld [vmem:[%s3 + $0x14] sm:$0xf]
  %v2804 = vld [vmem:[%s3 + $0x18] sm:$0xf]
  %v2805 = vld [vmem:[%s3 + $0x1c] sm:$0xf]
  %v2806 = vld [vmem:[%s3 + $0x20] sm:$0xf]
  %v2807 = vld [vmem:[%s3 + $0x24] sm:$0xf]
  %v2808 = vld [vmem:[%s3 + $0x28] sm:$0xf]
  %v2809 = vld [vmem:[%s3 + $0x2c] sm:$0xf]
  %v2810 = vld [vmem:[%s3 + $0x30] sm:$0xf]
  %v2811 = vld [vmem:[%s3 + $0x34] sm:$0xf]
  %v2812 = vld [vmem:[%s3 + $0x38] sm:$0xf]
  %v2813 = vld [vmem:[%s3 + $0x3c] sm:$0xf]
  %v2814 = vld [vmem:[%s3 + $0x40] sm:$0xf]
  %v2815 = vld [vmem:[%s3 + $0x44] sm:$0xf]
  %v2816 = vld [vmem:[%s3 + $0x48] sm:$0xf]
  %v2817 = vld [vmem:[%s3 + $0x4c] sm:$0xf]
  %v2818 = vld [vmem:[%s3 + $0x50] sm:$0xf]
  %v2819 = vld [vmem:[%s3 + $0x54] sm:$0xf]
  %v2820 = vld [vmem:[%s3 + $0x58] sm:$0xf]
  %v2821 = vld [vmem:[%s3 + $0x5c] sm:$0xf]
  %v2822 = vld [vmem:[%s3 + $0x60] sm:$0xf]
  %v2823 = vld [vmem:[%s3 + $0x64] sm:$0xf]
  %v2824 = vld [vmem:[%s3 + $0x68] sm:$0xf]
  %v2825 = vld [vmem:[%s3 + $0x6c] sm:$0xf]
  %v2826 = vld [vmem:[%s3 + $0x70] sm:$0xf]
  %v2827 = vld [vmem:[%s3 + $0x74] sm:$0xf]
  %v2828 = vld [vmem:[%s3 + $0x78] sm:$0xf]
  %v2829 = vld [vmem:[%s3 + $0x7c] sm:$0xf]
  %v2830 = vld [vmem:[%s3 + $0x80] sm:$0xf]
  %v2831 = vld [vmem:[%s3 + $0x84] sm:$0xf]
  %v2832 = vld [vmem:[%s3 + $0x88] sm:$0xf]
  %v2833 = vld [vmem:[%s3 + $0x8c] sm:$0xf]
  %v2834 = vld [vmem:[%s3 + $0x90] sm:$0xf]
  %v2835 = vld [vmem:[%s3 + $0x94] sm:$0xf]
  %v2836 = vld [vmem:[%s3 + $0x98] sm:$0xf]
  %v2837 = vld [vmem:[%s3 + $0x9c] sm:$0xf]
  %v2838 = vld [vmem:[%s3 + $0xa0] sm:$0xf]
  %v2839 = vld [vmem:[%s3 + $0xa4] sm:$0xf]
  %v2840 = vld [vmem:[%s3 + $0xa8] sm:$0xf]
  %v2841 = vld [vmem:[%s3 + $0xac] sm:$0xf]
  %v2842 = vld [vmem:[%s3 + $0xb0] sm:$0xf]
  %v2843 = vld [vmem:[%s3 + $0xb4] sm:$0xf]
  %v2844 = vld [vmem:[%s3 + $0xb8] sm:$0xf]
  %v2845 = vld [vmem:[%s3 + $0xbc] sm:$0xf]
  %v2846 = vld [vmem:[%s3 + $0xc0] sm:$0xf]
  %v2847 = vld [vmem:[%s3 + $0xc4] sm:$0xf]
  %v2848 = vpack.c.bf16 %v2794, %v2794
  %v2849 = vpack.c.bf16 %v2795, %v2795
  %v2850 = vpack.c.bf16 %v2796, %v2796
  %v2851 = vpack.c.bf16 %v2797, %v2797
  %v2852 = vld [vmem:[%s8] sm:$0x1]
  %v2854 = vlaneseq
  %v2855 = vshrl.u32 %v2854, 7
  %v2856 = vsub.s32 0, %v2855
  %v2857 = vrot.slane %v2852, %v2856
  %v2909 = vunpack.c.l.b16 %v2798
  %v2910 = vunpack.c.l.b16 %v2799
  %v2911 = vunpack.c.l.b16 %v2800
  %v2912 = vunpack.c.l.b16 %v2801
  %v2913 = vunpack.c.l.b16 %v2802
  %v2914 = vunpack.c.l.b16 %v2803
  %v2915 = vunpack.c.l.b16 %v2804
  %v2916 = vunpack.c.l.b16 %v2805
  %v2917 = vunpack.c.l.b16 %v2806
  %v2918 = vunpack.c.l.b16 %v2807
  %v2919 = vunpack.c.l.b16 %v2808
  %v2920 = vunpack.c.l.b16 %v2809
  %v2921 = vunpack.c.l.b16 %v2810
  %v2922 = vunpack.c.l.b16 %v2811
  %v2923 = vunpack.c.l.b16 %v2812
  %v2924 = vunpack.c.l.b16 %v2813
  %v2925 = vunpack.c.l.b16 %v2814
  %v2926 = vunpack.c.l.b16 %v2815
  %v2927 = vunpack.c.l.b16 %v2816
  %v2928 = vunpack.c.l.b16 %v2817
  %v2929 = vunpack.c.l.b16 %v2818
  %v2930 = vunpack.c.l.b16 %v2819
  %v2931 = vunpack.c.l.b16 %v2820
  %v2932 = vunpack.c.l.b16 %v2821
  %v2933 = vunpack.c.l.b16 %v2822
  %v2934 = vunpack.c.l.b16 %v2823
  %v2935 = vunpack.c.l.b16 %v2824
  %v2936 = vunpack.c.l.b16 %v2825
  %v2937 = vunpack.c.l.b16 %v2826
  %v2938 = vunpack.c.l.b16 %v2827
  %v2939 = vunpack.c.l.b16 %v2828
  %v2940 = vunpack.c.l.b16 %v2829
  %v2941 = vunpack.c.l.b16 %v2830
  %v2942 = vunpack.c.l.b16 %v2831
  %v2943 = vunpack.c.l.b16 %v2832
  %v2944 = vunpack.c.l.b16 %v2833
  %v2945 = vunpack.c.l.b16 %v2834
  %v2946 = vunpack.c.l.b16 %v2835
  %v2947 = vunpack.c.l.b16 %v2836
  %v2948 = vunpack.c.l.b16 %v2837
  %v2949 = vunpack.c.l.b16 %v2838
  %v2950 = vunpack.c.l.b16 %v2839
  %v2951 = vunpack.c.l.b16 %v2840
  %v2952 = vunpack.c.l.b16 %v2841
  %v2953 = vunpack.c.l.b16 %v2842
  %v2954 = vunpack.c.l.b16 %v2843
  %v2955 = vunpack.c.l.b16 %v2844
  %v2956 = vunpack.c.l.b16 %v2845
  %v2957 = vunpack.c.l.b16 %v2846
  %v2958 = vunpack.c.l.b16 %v2847
  %v2959 = vpack.c.b16 %v2910, %v2909
  %v2960 = vpack.c.b16 %v2912, %v2911
  %v2961 = vpack.c.b16 %v2914, %v2913
  %v2962 = vpack.c.b16 %v2916, %v2915
  %v2963 = vpack.c.b16 %v2918, %v2917
  %v2964 = vpack.c.b16 %v2920, %v2919
  %v2965 = vpack.c.b16 %v2922, %v2921
  %v2966 = vpack.c.b16 %v2924, %v2923
  %v2967 = vpack.c.b16 %v2926, %v2925
  %v2968 = vpack.c.b16 %v2928, %v2927
  %v2969 = vpack.c.b16 %v2930, %v2929
  %v2970 = vpack.c.b16 %v2932, %v2931
  %v2971 = vpack.c.b16 %v2934, %v2933
  %v2972 = vpack.c.b16 %v2936, %v2935
  %v2973 = vpack.c.b16 %v2938, %v2937
  %v2974 = vpack.c.b16 %v2940, %v2939
  %v2975 = vpack.c.b16 %v2942, %v2941
  %v2976 = vpack.c.b16 %v2944, %v2943
  %v2977 = vpack.c.b16 %v2946, %v2945
  %v2978 = vpack.c.b16 %v2948, %v2947
  %v2979 = vpack.c.b16 %v2950, %v2949
  %v2980 = vpack.c.b16 %v2952, %v2951
  %v2981 = vpack.c.b16 %v2954, %v2953
  %v2982 = vpack.c.b16 %v2956, %v2955
  %v2983 = vpack.c.b16 %v2958, %v2957
  %vm3009 = vcmask 130048
  %v3011 = vsel %vm3009, %v2851, 0
  %3013 = vmatprep.subr.bf16.mxu0 0
  %3014 = vmatpush1.bf16.msra.mxu0 %v2959
  %3015 = vmatprep.subr.bf16.mxu0 0
  %3016 = vmatpush1.bf16.msra.mxu0 %v2960
  %3017 = vmatprep.subr.bf16.mxu0 0
  %3018 = vmatpush1.bf16.msra.mxu0 %v2961
  %3019 = vmatprep.subr.bf16.mxu0 0
  %3020 = vmatpush1.bf16.msra.mxu0 %v2962
  %3021 = vmatprep.subr.bf16.mxu0 0
  %3022 = vmatpush1.bf16.msra.mxu0 %v2963
  %3023 = vmatprep.subr.bf16.mxu0 0
  %3024 = vmatpush1.bf16.msra.mxu0 %v2964
  %3025 = vmatprep.subr.bf16.mxu0 0
  %3026 = vmatpush1.bf16.msra.mxu0 %v2965
  %3027 = vmatprep.subr.bf16.mxu0 0
  %3028 = vmatpush1.bf16.msra.mxu0 %v2966
  %3029 = vmatprep.subr.bf16.mxu0 0
  %3030 = vmatpush1.bf16.msra.mxu0 %v2967
  %3031 = vmatprep.subr.bf16.mxu0 0
  %3032 = vmatpush1.bf16.msra.mxu0 %v2968
  %3033 = vmatprep.subr.bf16.mxu0 0
  %3034 = vmatpush1.bf16.msra.mxu0 %v2969
  %3035 = vmatprep.subr.bf16.mxu0 0
  %3036 = vmatpush1.bf16.msra.mxu0 %v2970
  %3037 = vmatprep.subr.bf16.mxu0 0
  %3038 = vmatpush1.bf16.msra.mxu0 %v2971
  %3039 = vmatprep.subr.bf16.mxu0 0
  %3040 = vmatpush1.bf16.msra.mxu0 %v2972
  %3041 = vmatprep.subr.bf16.mxu0 0
  %3042 = vmatpush1.bf16.msra.mxu0 %v2973
  %3043 = vmatprep.subr.bf16.mxu0 0
  %3044 = vmatpush1.bf16.msra.mxu0 %v2974
  %3045 = vmatprep.mubr.bf16.mxu0 %v2849
  %3046 = vmatmul.mubr.bf16.gmra.mrb[0].mxu0 %v2848
  %v3047 = vpop.f32.mrb[0].mxu0
  %v3048 = vadd.f32 %v2857, %v3047
  %v3049 = vpop.f32.mrb[0].mxu0
  %v3050 = vpop.f32.mrb[0].mxu0
  %v3051 = vpop.f32.mrb[0].mxu0
  %3052 = vdwg.mxu0
  %3053 = vmatprep.subr.bf16.mxu0 0
  %3054 = vmatpush1.bf16.msra.mxu0 %v2975
  %3055 = vmatprep.subr.bf16.mxu0 0
  %3056 = vmatpush1.bf16.msra.mxu0 %v2976
  %3057 = vmatprep.subr.bf16.mxu0 0
  %3058 = vmatpush1.bf16.msra.mxu0 %v2977
  %3059 = vmatprep.subr.bf16.mxu0 0
  %3060 = vmatpush1.bf16.msra.mxu0 %v2978
  %3061 = vmatprep.subr.bf16.mxu0 0
  %3062 = vmatpush1.bf16.msra.mxu0 %v2979
  %3063 = vmatprep.subr.bf16.mxu0 0
  %3064 = vmatpush1.bf16.msra.mxu0 %v2980
  %3065 = vmatprep.subr.bf16.mxu0 0
  %3066 = vmatpush1.bf16.msra.mxu0 %v2981
  %3067 = vmatprep.subr.bf16.mxu0 0
  %3068 = vmatpush1.bf16.msra.mxu0 %v2982
  %3069 = vmatprep.subr.bf16.mxu0 0
  %3070 = vmatpush1.bf16.msra.mxu0 %v2983
  %3071 = vmatprep.subr.bf16.mxu0 0
  %3072 = vmatpush1.bf16.msra.mxu0 0
  %3073 = vmatprep.subr.bf16.mxu0 0
  %3074 = vmatpush1.bf16.msra.mxu0 0
  %3075 = vmatprep.subr.bf16.mxu0 0
  %3076 = vmatpush1.bf16.msra.mxu0 0
  %3077 = vmatprep.subr.bf16.mxu0 0
  %3078 = vmatpush1.bf16.msra.mxu0 0
  %3079 = vmatprep.subr.bf16.mxu0 0
  %3080 = vmatpush1.bf16.msra.mxu0 0
  %3081 = vmatprep.subr.bf16.mxu0 0
  %3082 = vmatpush1.bf16.msra.mxu0 0
  %3083 = vmatprep.subr.bf16.mxu0 0
  %3084 = vmatpush1.bf16.msra.mxu0 0
  %3085 = vmatprep.mubr.bf16.mxu0 %v3011
  %3086 = vmatmul.mubr.bf16.gmra.mrb[0].mxu0 %v2850
  %v3087 = vpop.f32.mrb[0].mxu0
  %v3088 = vadd.f32 %v3048, %v3087
  %v3089 = vpop.f32.mrb[0].mxu0
  %v3090 = vpop.f32.mrb[0].mxu0
  %v3091 = vpop.f32.mrb[0].mxu0
  %3092 = vdwg.mxu0
  %vm3093 = vcmp.ge.f32.partialorder %v3088, 0.0
  %v3094 = vmul.f32 %v3088, 0.01
  %v3095 = vsel %vm3093, %v3088, %v3094
  %v3096 = vld [vmem:[%s4] sm:$0xf]
  %v3097 = vld [vmem:[%s4 + $0x4] sm:$0xf]
  %v3098 = vld [vmem:[%s4 + $0x8] sm:$0xf]
  %v3099 = vld [vmem:[%s4 + $0xc] sm:$0xf]
  %v3100 = vpack.c.bf16 %v3095, %v3095
  %v3101 = vld [vmem:[%s9] sm:$0x1]
  %v3103 = vlaneseq
  %v3104 = vshrl.u32 %v3103, 7
  %v3105 = vsub.s32 0, %v3104
  %v3106 = vrot.slane %v3101, %v3105
  %v3112 = vunpack.c.l.b16 %v3096
  %v3113 = vunpack.c.l.b16 %v3097
  %v3114 = vunpack.c.l.b16 %v3098
  %v3115 = vunpack.c.l.b16 %v3099
  %v3116 = vpack.c.b16 %v3113, %v3112
  %v3117 = vpack.c.b16 %v3115, %v3114
  %vm3120 = vcmask 261120
  %v3122 = vsel %vm3120, %v3100, 0
  %3124 = vmatprep.subr.bf16.mxu0 0
  %3125 = vmatpush1.bf16.msra.mxu0 %v3116
  %3126 = vmatprep.subr.bf16.mxu0 0
  %3127 = vmatpush1.bf16.msra.mxu0 %v3117
  %3128 = vmatprep.subr.bf16.mxu0 0
  %3129 = vmatpush1.bf16.msra.mxu0 0
  %3130 = vmatprep.subr.bf16.mxu0 0
  %3131 = vmatpush1.bf16.msra.mxu0 0
  %3132 = vmatprep.subr.bf16.mxu0 0
  %3133 = vmatpush1.bf16.msra.mxu0 0
  %3134 = vmatprep.subr.bf16.mxu0 0
  %3135 = vmatpush1.bf16.msra.mxu0 0
  %3136 = vmatprep.subr.bf16.mxu0 0
  %3137 = vmatpush1.bf16.msra.mxu0 0
  %3138 = vmatprep.subr.bf16.mxu0 0
  %3139 = vmatpush1.bf16.msra.mxu0 0
  %3140 = vmatprep.subr.bf16.mxu0 0
  %3141 = vmatpush1.bf16.msra.mxu0 0
  %3142 = vmatprep.subr.bf16.mxu0 0
  %3143 = vmatpush1.bf16.msra.mxu0 0
  %3144 = vmatprep.subr.bf16.mxu0 0
  %3145 = vmatpush1.bf16.msra.mxu0 0
  %3146 = vmatprep.subr.bf16.mxu0 0
  %3147 = vmatpush1.bf16.msra.mxu0 0
  %3148 = vmatprep.subr.bf16.mxu0 0
  %3149 = vmatpush1.bf16.msra.mxu0 0
  %3150 = vmatprep.subr.bf16.mxu0 0
  %3151 = vmatpush1.bf16.msra.mxu0 0
  %3152 = vmatprep.subr.bf16.mxu0 0
  %3153 = vmatpush1.bf16.msra.mxu0 0
  %3154 = vmatprep.subr.bf16.mxu0 0
  %3155 = vmatpush1.bf16.msra.mxu0 0
  %3156 = vmatprep.mubr.bf16.mxu0 0
  %3157 = vmatmul.mubr.bf16.gmra.mrb[0].mxu0 %v3122
  %v3158 = vpop.f32.mrb[0].mxu0
  %v3159 = vadd.f32 %v3106, %v3158
  %v3160 = vpop.f32.mrb[0].mxu0
  %v3161 = vpop.f32.mrb[0].mxu0
  %v3162 = vpop.f32.mrb[0].mxu0
  %3163 = vdwg.mxu0
  %v3164 = vtanh.pop %v3159
  %v3165 = vld [vmem:[%s5] sm:$0xf]
  %v3166 = vld [vmem:[%s5 + $0x4] sm:$0xf]
  %v3167 = vld [vmem:[%s5 + $0x8] sm:$0xf]
  %v3168 = vld [vmem:[%s5 + $0xc] sm:$0xf]
  %v3169 = vld [vmem:[%s5 + $0x10] sm:$0xf]
  %v3170 = vld [vmem:[%s5 + $0x14] sm:$0xf]
  %v3171 = vld [vmem:[%s5 + $0x18] sm:$0xf]
  %v3172 = vld [vmem:[%s5 + $0x1c] sm:$0xf]
  %v3173 = vpack.c.bf16 %v3164, %v3164
  %v3174 = vld [vmem:[%s10] sm:$0x1]
  %v3176 = vlaneseq
  %v3177 = vshrl.u32 %v3176, 7
  %v3178 = vsub.s32 0, %v3177
  %v3179 = vrot.slane %v3174, %v3178
  %v3189 = vunpack.c.l.b16 %v3165
  %v3190 = vunpack.c.l.b16 %v3166
  %v3191 = vunpack.c.l.b16 %v3167
  %v3192 = vunpack.c.l.b16 %v3168
  %v3193 = vunpack.c.l.b16 %v3169
  %v3194 = vunpack.c.l.b16 %v3170
  %v3195 = vunpack.c.l.b16 %v3171
  %v3196 = vunpack.c.l.b16 %v3172
  %v3197 = vpack.c.b16 %v3190, %v3189
  %v3198 = vpack.c.b16 %v3192, %v3191
  %v3199 = vpack.c.b16 %v3194, %v3193
  %v3200 = vpack.c.b16 %v3196, %v3195
  %vm3205 = vcmask 523264
  %v3207 = vsel %vm3205, %v3173, 0
  %3209 = vmatprep.subr.bf16.mxu0 0
  %3210 = vmatpush1.bf16.msra.mxu0 %v3197
  %3211 = vmatprep.subr.bf16.mxu0 0
  %3212 = vmatpush1.bf16.msra.mxu0 %v3198
  %3213 = vmatprep.subr.bf16.mxu0 0
  %3214 = vmatpush1.bf16.msra.mxu0 %v3199
  %3215 = vmatprep.subr.bf16.mxu0 0
  %3216 = vmatpush1.bf16.msra.mxu0 %v3200
  %3217 = vmatprep.subr.bf16.mxu0 0
  %3218 = vmatpush1.bf16.msra.mxu0 0
  %3219 = vmatprep.subr.bf16.mxu0 0
  %3220 = vmatpush1.bf16.msra.mxu0 0
  %3221 = vmatprep.subr.bf16.mxu0 0
  %3222 = vmatpush1.bf16.msra.mxu0 0
  %3223 = vmatprep.subr.bf16.mxu0 0
  %3224 = vmatpush1.bf16.msra.mxu0 0
  %3225 = vmatprep.subr.bf16.mxu0 0
  %3226 = vmatpush1.bf16.msra.mxu0 0
  %3227 = vmatprep.subr.bf16.mxu0 0
  %3228 = vmatpush1.bf16.msra.mxu0 0
  %3229 = vmatprep.subr.bf16.mxu0 0
  %3230 = vmatpush1.bf16.msra.mxu0 0
  %3231 = vmatprep.subr.bf16.mxu0 0
  %3232 = vmatpush1.bf16.msra.mxu0 0
  %3233 = vmatprep.subr.bf16.mxu0 0
  %3234 = vmatpush1.bf16.msra.mxu0 0
  %3235 = vmatprep.subr.bf16.mxu0 0
  %3236 = vmatpush1.bf16.msra.mxu0 0
  %3237 = vmatprep.subr.bf16.mxu0 0
  %3238 = vmatpush1.bf16.msra.mxu0 0
  %3239 = vmatprep.subr.bf16.mxu0 0
  %3240 = vmatpush1.bf16.msra.mxu0 0
  %3241 = vmatprep.mubr.bf16.mxu0 0
  %3242 = vmatmul.mubr.bf16.gmra.mrb[0].mxu0 %v3207
  %v3243 = vpop.f32.mrb[0].mxu0
  %v3244 = vadd.f32 %v3179, %v3243
  %v3245 = vpop.f32.mrb[0].mxu0
  %v3246 = vpop.f32.mrb[0].mxu0
  %v3247 = vpop.f32.mrb[0].mxu0
  %3248 = vdwg.mxu0
  %3249 = vst [vmem:[%s11] sm:$0x3] %v3244
  // Predicated region
  $region46: #{_lambda_.1} parent=0 // pred_check
    _
  $region47: #{_lambda_.1} parent=0 // pred_check_branch
    %3251 = sbr.rel (0) target = $region49
  $region48: #{_lambda_.1} parent=0 // pred_region
    _
  $region49: #{_lambda_.1} parent=0 // pred_fallthru
    _
  // Predicated region
  $region50: #{_lambda_.1} parent=0 // pred_check
    _
  $region51: #{_lambda_.1} parent=0 // pred_check_branch
    %3253 = sbr.rel (0) target = $region53
  $region52: #{_lambda_.1} parent=0 // pred_region
    _
  $region53: #{_lambda_.1} parent=0 // pred_fallthru
    _

</llo_original>
